<compile_context>
chip_gen: v7x
topology: tpu7x:2x2x1
jax: 0.10.0
libtpu: 0.0.40
codegen_flags: <defaults>
</compile_context>

<pallas_src>
import math

import numpy as np
import jax
import jax.numpy as jnp
from jax import lax
from jax.experimental import pallas as pl
from jax.experimental.pallas import tpu as pltpu

EPS = 1e-5  # nn.InstanceNorm2d default eps


# ---------------------------------------------------------------------------
# Kernel (factory closes over static shape parameters)
# ---------------------------------------------------------------------------
def _make_kernel(num_layers, Nb, H, W, C):
    WC = W * C
    R = Nb * H                      # total rows processed per grid step
    inv_hw = 1.0 / float(H * W)

    def kernel(x_ref, w_ref, o_ref):
        # x_ref, o_ref : (Nb, H, WC) f32 lane-dense slabs
        # w_ref        : (num_layers, 3*WC, WC) bf16 fused banded conv weights

        # Border masks, hoisted once and reused by every conv layer.
        row = lax.broadcasted_iota(jnp.int32, (R, WC), 0)
        top = (row % H) == 0            # rows whose "up" neighbor is zero pad
        bot = (row % H) == H - 1        # rows whose "down" neighbor is zero pad

        def conv_instnorm(a, layer, relu):
            """3x3 conv (zero pad 1) + InstanceNorm2d(affine=False) (+ReLU).

            a: (R, WC) f32, lane-dense: a[n*H + y, x*C + c] = act[n, y, x, c]
            """
            # Vertical taps via circular sublane rolls (XLU) + edge masks.
            up = jnp.where(top, 0.0, pltpu.roll(a, shift=1, axis=0))
            dn = jnp.where(bot, 0.0, pltpu.roll(a, shift=R - 1, axis=0))

            # One fused MXU matmul: K = 3*WC (taps concatenated along lanes),
            # horizontal taps + channel mixing folded into the banded weight.
            x3 = jnp.concatenate([up, a, dn], axis=1).astype(jnp.bfloat16)
            acc = jnp.dot(x3, w_ref[layer],
                          preferred_element_type=jnp.float32)   # (R, WC) f32
            # NOTE: conv bias omitted — cancels under InstanceNorm(affine=False).

            # InstanceNorm2d stats, per image:
            #   1) sublane row-sum per H-row segment (XLU),
            #   2) same-channel lane tree-reduce with strided circular rolls
            #      (lanes at stride C hold the same channel; W is a power of 2).
            a3 = acc.reshape(Nb, H, WC)
            s = jnp.sum(a3, axis=1)                 # (Nb, WC)
            s2 = jnp.sum(a3 * a3, axis=1)           # (Nb, WC)
            shift = C
            while shift < WC:                       # log2(W) steps
                s = s + pltpu.roll(s, shift=shift, axis=1)
                s2 = s2 + pltpu.roll(s2, shift=shift, axis=1)
                shift *= 2
            mean = s * inv_hw
            var = jnp.maximum(s2 * inv_hw - mean * mean, 0.0)
            out = (a3 - mean[:, None, :]) * lax.rsqrt(var[:, None, :] + EPS)
            out = out.reshape(R, WC)
            if relu:
                out = jnp.maximum(out, 0.0)
            return out

        act = x_ref[...].reshape(R, WC)
        for blk in range(num_layers // 2):          # static unroll, small count
            h = conv_instnorm(act, 2 * blk, relu=True)
            r = conv_instnorm(h, 2 * blk + 1, relu=False)
            act = act + 0.1 * r                     # out = x + 0.1 * residual
        o_ref[...] = act.reshape(Nb, H, WC)

    return kernel


# ---------------------------------------------------------------------------
# Host-side weight preparation
# ---------------------------------------------------------------------------
def _build_fused_banded_weight(w_hwio, W, C):
    """Fold horizontal taps + channel mixing of a 3x3 conv into one
    (3*W*C, W*C) block-banded matrix so that, with the lane-dense layout and
    taps concatenated along K as [up | center | down]:

        out = concat([shift(x,+1), x, shift(x,-1)], axis=1) @ fused

    fused[ky*WC + (x+kx-1)*C + ci, x*C + co] = w_hwio[ky, kx, ci, co]
    (columns with x+kx-1 outside [0, W) dropped -> implicit zero padding).
    """
    WC = W * C
    w_np = np.asarray(w_hwio, np.float32)            # (ky, kx, ci, co)
    band = np.zeros((3, WC, WC), np.float32)
    for ky in range(3):
        for kx in range(3):
            for x in range(W):
                xs = x + kx - 1
                if 0 <= xs < W:
                    band[ky, xs * C:(xs + 1) * C, x * C:(x + 1) * C] = w_np[ky, kx]
    return band.reshape(3 * WC, WC)


def prepare_kernel_weights(conv_ws, W, C):
    """conv_ws: list of (3,3,C,C) HWIO conv kernels, length num_blocks*2."""
    fused = np.stack([_build_fused_banded_weight(w, W, C) for w in conv_ws])
    return jnp.asarray(fused, dtype=jnp.bfloat16)    # (L, 3*W*C, W*C)


# ---------------------------------------------------------------------------
# Pallas wrapper
# ---------------------------------------------------------------------------
def resblocks_forward(x_nchw, w_fused):
    """Fused ResBlocks forward.  x_nchw: (N, C, H, W) f32."""
    N, C, H, W = x_nchw.shape
    WC = W * C
    L = w_fused.shape[0]
    assert W > 0 and (W & (W - 1)) == 0, "lane tree-reduce needs power-of-two W"

    # Batch images per grid step to raise the matmul M dimension (Nb*H).
    # Keep 2 grid steps for larger even batches (lets v7x shard across TCs).
    G = 2 if (N >= 4 and N % 2 == 0) else 1
    Nb = N // G

    # Layout plumbing: NCHW -> lane-dense (N, H, W*C) slabs so all HBM
    # loads/stores are full-lane (W*C = 128 for the test shape).
    x_lanes = jnp.transpose(x_nchw, (0, 2, 3, 1)).reshape(N, H, WC)

    kernel = _make_kernel(L, Nb, H, W, C)
    out_lanes = pl.pallas_call(
        kernel,
        out_shape=jax.ShapeDtypeStruct((N, H, WC), jnp.float32),
        grid_spec=pltpu.PrefetchScalarGridSpec(
            num_scalar_prefetch=0,
            grid=(G,),                                # Nb images per step
            in_specs=[
                pl.BlockSpec((Nb, H, WC), lambda g: (g, 0, 0)),
                pl.BlockSpec((L, 3 * WC, WC), lambda g: (0, 0, 0)),
            ],
            out_specs=pl.BlockSpec((Nb, H, WC), lambda g: (g, 0, 0)),
        ),
        compiler_params=pltpu.CompilerParams(
            dimension_semantics=("parallel",),
            vmem_limit_bytes=32 * 1024 * 1024),
        # Activation slab is fully consumed -> alias it to the output.
        input_output_aliases={0: 0},
    )(x_lanes, w_fused)

    return jnp.transpose(out_lanes.reshape(N, H, W, C), (0, 3, 1, 2))


# ---------------------------------------------------------------------------
# Pure-JAX f32 reference (mirrors the PyTorch module, incl. conv bias)
# ---------------------------------------------------------------------------
def resblocks_reference(x_nchw, conv_ws, conv_bs):
    def conv_block(h, w, b, relu):
        y = lax.conv_general_dilated(
            h, w, window_strides=(1, 1), padding="SAME",
            dimension_numbers=("NHWC", "HWIO", "NHWC")) + b
        m = jnp.mean(y, axis=(1, 2), keepdims=True)
        v = jnp.mean((y - m) ** 2, axis=(1, 2), keepdims=True)
        y = (y - m) * lax.rsqrt(v + EPS)
        return jnp.maximum(y, 0.0) if relu else y

    x = jnp.transpose(x_nchw, (0, 2, 3, 1))   # NHWC
    for blk in range(len(conv_ws) // 2):
        h = conv_block(x, conv_ws[2 * blk], conv_bs[2 * blk], relu=True)
        r = conv_block(h, conv_ws[2 * blk + 1], conv_bs[2 * blk + 1], relu=False)
        x = x + 0.1 * r
    return jnp.transpose(x, (0, 3, 1, 2))


if __name__ == "__main__":
    num_blocks = 2
    N, C, H, W = 2, 8, 16, 16        # ResBlocks(num_blocks=2, dim=8); W*C = 128

    key = jax.random.PRNGKey(0)
    key, kx = jax.random.split(key)
    x = jax.random.normal(kx, (N, C, H, W), jnp.float32)

    # Synthetic nn.Conv2d(dim, dim, 3) parameters (HWIO), Kaiming-uniform-like.
    bound = 1.0 / math.sqrt(C * 9)
    conv_ws, conv_bs = [], []
    for _ in range(2 * num_blocks):
        key, kw, kb = jax.random.split(key, 3)
        conv_ws.append(jax.random.uniform(kw, (3, 3, C, C), jnp.float32, -bound, bound))
        conv_bs.append(jax.random.uniform(kb, (C,), jnp.float32, -bound, bound))

    w_fused = prepare_kernel_weights(conv_ws, W, C)

    out = jax.block_until_ready(jax.jit(resblocks_forward)(x, w_fused))
    assert out.shape == (N, C, H, W)
    assert bool(jnp.all(jnp.isfinite(out)))

    # Validate against the f32 reference (kernel conv matmuls run in bf16).
    ref = resblocks_reference(x, conv_ws, conv_bs)
    max_err = float(jnp.max(jnp.abs(out - ref)))
    assert max_err < 5e-2, f"kernel vs reference max abs err = {max_err}"
    print("KERNEL_OK")
</pallas_src>

<mosaic_0001>
module attributes {stable_mosaic.version = 11 : i64} {
  func.func @kernel(%arg0: i32, %arg1: memref<2x16x128xf32, #tpu.memory_space<vmem>>, %arg2: memref<4x384x128xbf16, #tpu.memory_space<vmem>>, %arg3: memref<2x16x128xf32, #tpu.memory_space<vmem>>) attributes {dimension_semantics = [#tpu.dimension_semantics<parallel>], iteration_bounds = array<i64: 1>, scalar_prefetch = 0 : i64, scratch_operands = 0 : i64, tpu.core_type = #tpu.core_type<tc>, window_params = [{transform_indices = @transform_0, window_bounds = array<i64: 2, 16, 128>}, {pipeline_mode = #tpu.pipeline_mode<synchronous>, transform_indices = @transform_1, window_bounds = array<i64: 4, 384, 128>}, {transform_indices = @transform_2, window_bounds = array<i64: 2, 16, 128>}]} {
    %0 = tpu.iota {dimensions = array<i32: 0>} : vector<32x128xi32>
    %c16_i32 = arith.constant 16 : i32
    %c0_i32 = arith.constant 0 : i32
    %1 = arith.cmpi eq, %c16_i32, %c0_i32 : i32
    %c1_i32 = arith.constant 1 : i32
    %2 = arith.select %1, %c1_i32, %c16_i32 : i32
    %3 = vector.broadcast %2 : i32 to vector<32x128xi32>
    %4 = arith.remsi %0, %3 : vector<32x128xi32>
    %c0_i32_0 = arith.constant 0 : i32
    %5 = vector.broadcast %c0_i32_0 : i32 to vector<32x128xi32>
    %6 = arith.cmpi ne, %4, %5 : vector<32x128xi32>
    %c0_i32_1 = arith.constant 0 : i32
    %7 = vector.broadcast %c0_i32_1 : i32 to vector<32x128xi32>
    %8 = arith.cmpi slt, %4, %7 : vector<32x128xi32>
    %c0_i32_2 = arith.constant 0 : i32
    %9 = arith.cmpi slt, %2, %c0_i32_2 : i32
    %10 = vector.broadcast %9 : i1 to vector<32x128xi1>
    %11 = vector.broadcast %10 : vector<32x128xi1> to vector<32x128xi1>
    %12 = arith.xori %8, %11 : vector<32x128xi1>
    %13 = arith.andi %12, %6 : vector<32x128xi1>
    %14 = vector.broadcast %2 : i32 to vector<32x128xi32>
    %15 = arith.addi %4, %14 : vector<32x128xi32>
    %16 = arith.select %13, %15, %4 : vector<32x128xi1>, vector<32x128xi32>
    %c0_i32_3 = arith.constant 0 : i32
    %17 = vector.broadcast %c0_i32_3 : i32 to vector<32x128xi32>
    %18 = arith.cmpi eq, %16, %17 : vector<32x128xi32>
    %c16_i32_4 = arith.constant 16 : i32
    %c0_i32_5 = arith.constant 0 : i32
    %19 = arith.cmpi eq, %c16_i32_4, %c0_i32_5 : i32
    %c1_i32_6 = arith.constant 1 : i32
    %20 = arith.select %19, %c1_i32_6, %c16_i32_4 : i32
    %21 = vector.broadcast %20 : i32 to vector<32x128xi32>
    %22 = arith.remsi %0, %21 : vector<32x128xi32>
    %c0_i32_7 = arith.constant 0 : i32
    %23 = vector.broadcast %c0_i32_7 : i32 to vector<32x128xi32>
    %24 = arith.cmpi ne, %22, %23 : vector<32x128xi32>
    %c0_i32_8 = arith.constant 0 : i32
    %25 = vector.broadcast %c0_i32_8 : i32 to vector<32x128xi32>
    %26 = arith.cmpi slt, %22, %25 : vector<32x128xi32>
    %c0_i32_9 = arith.constant 0 : i32
    %27 = arith.cmpi slt, %20, %c0_i32_9 : i32
    %28 = vector.broadcast %27 : i1 to vector<32x128xi1>
    %29 = vector.broadcast %28 : vector<32x128xi1> to vector<32x128xi1>
    %30 = arith.xori %26, %29 : vector<32x128xi1>
    %31 = arith.andi %30, %24 : vector<32x128xi1>
    %32 = vector.broadcast %20 : i32 to vector<32x128xi32>
    %33 = arith.addi %22, %32 : vector<32x128xi32>
    %34 = arith.select %31, %33, %22 : vector<32x128xi1>, vector<32x128xi32>
    %c15_i32 = arith.constant 15 : i32
    %35 = vector.broadcast %c15_i32 : i32 to vector<32x128xi32>
    %36 = arith.cmpi eq, %34, %35 : vector<32x128xi32>
    %c0 = arith.constant 0 : index
    %c0_10 = arith.constant 0 : index
    %c0_11 = arith.constant 0 : index
    %37 = vector.load %arg1[%c0, %c0_10, %c0_11] : memref<2x16x128xf32, #tpu.memory_space<vmem>>, vector<2x16x128xf32>
    %38 = vector.shape_cast %37 : vector<2x16x128xf32> to vector<32x128xf32>
    %c1_i32_12 = arith.constant 1 : i32
    %39 = tpu.dynamic_rotate %38 by %c1_i32_12 dim 0 : vector<32x128xf32>, i32 -> vector<32x128xf32>
    %cst = arith.constant 0.000000e+00 : f32
    %40 = vector.broadcast %cst : f32 to vector<32x128xf32>
    %41 = arith.select %18, %40, %39 : vector<32x128xi1>, vector<32x128xf32>
    %c31_i32 = arith.constant 31 : i32
    %42 = tpu.dynamic_rotate %38 by %c31_i32 dim 0 : vector<32x128xf32>, i32 -> vector<32x128xf32>
    %cst_13 = arith.constant 0.000000e+00 : f32
    %43 = vector.broadcast %cst_13 : f32 to vector<32x128xf32>
    %44 = arith.select %36, %43, %42 : vector<32x128xi1>, vector<32x128xf32>
    %45 = tpu.concatenate %41, %38, %44 in 1 : vector<32x128xf32>, vector<32x128xf32>, vector<32x128xf32> -> vector<32x384xf32>
    %46 = arith.truncf %45 : vector<32x384xf32> to vector<32x384xbf16>
    %c0_14 = arith.constant 0 : index
    %c0_15 = arith.constant 0 : index
    %c0_16 = arith.constant 0 : index
    %47 = vector.load %arg2[%c0_14, %c0_15, %c0_16] : memref<4x384x128xbf16, #tpu.memory_space<vmem>>, vector<1x384x128xbf16>
    %48 = vector.shape_cast %47 : vector<1x384x128xbf16> to vector<384x128xbf16>
    %cst_17 = arith.constant dense<0.000000e+00> : vector<32x128xf32>
    %49 = tpu.matmul %46, %48, %cst_17 {dimension_numbers = #tpu.dot_dimension_numbers<[1], [0], [0], [1], [0, 0, 1, 1], [], []>} : vector<32x384xbf16>, vector<384x128xbf16>, vector<32x128xf32> -> vector<32x128xf32>
    %50 = vector.shape_cast %49 : vector<32x128xf32> to vector<2x16x128xf32>
    %cst_18 = arith.constant dense<0.000000e+00> : vector<2x128xf32>
    %51 = vector.multi_reduction <add>, %50, %cst_18 [1] : vector<2x16x128xf32> to vector<2x128xf32>
    %52 = arith.mulf %50, %50 : vector<2x16x128xf32>
    %cst_19 = arith.constant dense<0.000000e+00> : vector<2x128xf32>
    %53 = vector.multi_reduction <add>, %52, %cst_19 [1] : vector<2x16x128xf32> to vector<2x128xf32>
    %c8_i32 = arith.constant 8 : i32
    %54 = tpu.dynamic_rotate %51 by %c8_i32 dim 1 : vector<2x128xf32>, i32 -> vector<2x128xf32>
    %55 = arith.addf %51, %54 : vector<2x128xf32>
    %c8_i32_20 = arith.constant 8 : i32
    %56 = tpu.dynamic_rotate %53 by %c8_i32_20 dim 1 : vector<2x128xf32>, i32 -> vector<2x128xf32>
    %57 = arith.addf %53, %56 : vector<2x128xf32>
    %c16_i32_21 = arith.constant 16 : i32
    %58 = tpu.dynamic_rotate %55 by %c16_i32_21 dim 1 : vector<2x128xf32>, i32 -> vector<2x128xf32>
    %59 = arith.addf %55, %58 : vector<2x128xf32>
    %c16_i32_22 = arith.constant 16 : i32
    %60 = tpu.dynamic_rotate %57 by %c16_i32_22 dim 1 : vector<2x128xf32>, i32 -> vector<2x128xf32>
    %61 = arith.addf %57, %60 : vector<2x128xf32>
    %c32_i32 = arith.constant 32 : i32
    %62 = tpu.dynamic_rotate %59 by %c32_i32 dim 1 : vector<2x128xf32>, i32 -> vector<2x128xf32>
    %63 = arith.addf %59, %62 : vector<2x128xf32>
    %c32_i32_23 = arith.constant 32 : i32
    %64 = tpu.dynamic_rotate %61 by %c32_i32_23 dim 1 : vector<2x128xf32>, i32 -> vector<2x128xf32>
    %65 = arith.addf %61, %64 : vector<2x128xf32>
    %c64_i32 = arith.constant 64 : i32
    %66 = tpu.dynamic_rotate %63 by %c64_i32 dim 1 : vector<2x128xf32>, i32 -> vector<2x128xf32>
    %67 = arith.addf %63, %66 : vector<2x128xf32>
    %c64_i32_24 = arith.constant 64 : i32
    %68 = tpu.dynamic_rotate %65 by %c64_i32_24 dim 1 : vector<2x128xf32>, i32 -> vector<2x128xf32>
    %69 = arith.addf %65, %68 : vector<2x128xf32>
    %cst_25 = arith.constant 3.906250e-03 : f32
    %70 = vector.broadcast %cst_25 : f32 to vector<2x128xf32>
    %71 = arith.mulf %67, %70 : vector<2x128xf32>
    %cst_26 = arith.constant 3.906250e-03 : f32
    %72 = vector.broadcast %cst_26 : f32 to vector<2x128xf32>
    %73 = arith.mulf %69, %72 : vector<2x128xf32>
    %74 = arith.mulf %71, %71 : vector<2x128xf32>
    %75 = arith.subf %73, %74 : vector<2x128xf32>
    %cst_27 = arith.constant 0.000000e+00 : f32
    %76 = vector.broadcast %cst_27 : f32 to vector<2x128xf32>
    %77 = arith.maximumf %75, %76 : vector<2x128xf32>
    %78 = vector.shape_cast %71 : vector<2x128xf32> to vector<2x1x128xf32>
    %79 = vector.broadcast %78 : vector<2x1x128xf32> to vector<2x16x128xf32>
    %80 = arith.subf %50, %79 : vector<2x16x128xf32>
    %81 = vector.shape_cast %77 : vector<2x128xf32> to vector<2x1x128xf32>
    %cst_28 = arith.constant 9.99999974E-6 : f32
    %82 = vector.broadcast %cst_28 : f32 to vector<2x1x128xf32>
    %83 = arith.addf %81, %82 : vector<2x1x128xf32>
    %84 = math.rsqrt %83 : vector<2x1x128xf32>
    %85 = vector.broadcast %84 : vector<2x1x128xf32> to vector<2x16x128xf32>
    %86 = arith.mulf %80, %85 : vector<2x16x128xf32>
    %87 = vector.shape_cast %86 : vector<2x16x128xf32> to vector<32x128xf32>
    %cst_29 = arith.constant 0.000000e+00 : f32
    %88 = vector.broadcast %cst_29 : f32 to vector<32x128xf32>
    %89 = arith.maximumf %87, %88 : vector<32x128xf32>
    %c1_i32_30 = arith.constant 1 : i32
    %90 = tpu.dynamic_rotate %89 by %c1_i32_30 dim 0 : vector<32x128xf32>, i32 -> vector<32x128xf32>
    %cst_31 = arith.constant 0.000000e+00 : f32
    %91 = vector.broadcast %cst_31 : f32 to vector<32x128xf32>
    %92 = arith.select %18, %91, %90 : vector<32x128xi1>, vector<32x128xf32>
    %c31_i32_32 = arith.constant 31 : i32
    %93 = tpu.dynamic_rotate %89 by %c31_i32_32 dim 0 : vector<32x128xf32>, i32 -> vector<32x128xf32>
    %cst_33 = arith.constant 0.000000e+00 : f32
    %94 = vector.broadcast %cst_33 : f32 to vector<32x128xf32>
    %95 = arith.select %36, %94, %93 : vector<32x128xi1>, vector<32x128xf32>
    %96 = tpu.concatenate %92, %89, %95 in 1 : vector<32x128xf32>, vector<32x128xf32>, vector<32x128xf32> -> vector<32x384xf32>
    %97 = arith.truncf %96 : vector<32x384xf32> to vector<32x384xbf16>
    %c1 = arith.constant 1 : index
    %c0_34 = arith.constant 0 : index
    %c0_35 = arith.constant 0 : index
    %98 = vector.load %arg2[%c1, %c0_34, %c0_35] : memref<4x384x128xbf16, #tpu.memory_space<vmem>>, vector<1x384x128xbf16>
    %99 = vector.shape_cast %98 : vector<1x384x128xbf16> to vector<384x128xbf16>
    %cst_36 = arith.constant dense<0.000000e+00> : vector<32x128xf32>
    %100 = tpu.matmul %97, %99, %cst_36 {dimension_numbers = #tpu.dot_dimension_numbers<[1], [0], [0], [1], [0, 0, 1, 1], [], []>} : vector<32x384xbf16>, vector<384x128xbf16>, vector<32x128xf32> -> vector<32x128xf32>
    %101 = vector.shape_cast %100 : vector<32x128xf32> to vector<2x16x128xf32>
    %cst_37 = arith.constant dense<0.000000e+00> : vector<2x128xf32>
    %102 = vector.multi_reduction <add>, %101, %cst_37 [1] : vector<2x16x128xf32> to vector<2x128xf32>
    %103 = arith.mulf %101, %101 : vector<2x16x128xf32>
    %cst_38 = arith.constant dense<0.000000e+00> : vector<2x128xf32>
    %104 = vector.multi_reduction <add>, %103, %cst_38 [1] : vector<2x16x128xf32> to vector<2x128xf32>
    %c8_i32_39 = arith.constant 8 : i32
    %105 = tpu.dynamic_rotate %102 by %c8_i32_39 dim 1 : vector<2x128xf32>, i32 -> vector<2x128xf32>
    %106 = arith.addf %102, %105 : vector<2x128xf32>
    %c8_i32_40 = arith.constant 8 : i32
    %107 = tpu.dynamic_rotate %104 by %c8_i32_40 dim 1 : vector<2x128xf32>, i32 -> vector<2x128xf32>
    %108 = arith.addf %104, %107 : vector<2x128xf32>
    %c16_i32_41 = arith.constant 16 : i32
    %109 = tpu.dynamic_rotate %106 by %c16_i32_41 dim 1 : vector<2x128xf32>, i32 -> vector<2x128xf32>
    %110 = arith.addf %106, %109 : vector<2x128xf32>
    %c16_i32_42 = arith.constant 16 : i32
    %111 = tpu.dynamic_rotate %108 by %c16_i32_42 dim 1 : vector<2x128xf32>, i32 -> vector<2x128xf32>
    %112 = arith.addf %108, %111 : vector<2x128xf32>
    %c32_i32_43 = arith.constant 32 : i32
    %113 = tpu.dynamic_rotate %110 by %c32_i32_43 dim 1 : vector<2x128xf32>, i32 -> vector<2x128xf32>
    %114 = arith.addf %110, %113 : vector<2x128xf32>
    %c32_i32_44 = arith.constant 32 : i32
    %115 = tpu.dynamic_rotate %112 by %c32_i32_44 dim 1 : vector<2x128xf32>, i32 -> vector<2x128xf32>
    %116 = arith.addf %112, %115 : vector<2x128xf32>
    %c64_i32_45 = arith.constant 64 : i32
    %117 = tpu.dynamic_rotate %114 by %c64_i32_45 dim 1 : vector<2x128xf32>, i32 -> vector<2x128xf32>
    %118 = arith.addf %114, %117 : vector<2x128xf32>
    %c64_i32_46 = arith.constant 64 : i32
    %119 = tpu.dynamic_rotate %116 by %c64_i32_46 dim 1 : vector<2x128xf32>, i32 -> vector<2x128xf32>
    %120 = arith.addf %116, %119 : vector<2x128xf32>
    %cst_47 = arith.constant 3.906250e-03 : f32
    %121 = vector.broadcast %cst_47 : f32 to vector<2x128xf32>
    %122 = arith.mulf %118, %121 : vector<2x128xf32>
    %cst_48 = arith.constant 3.906250e-03 : f32
    %123 = vector.broadcast %cst_48 : f32 to vector<2x128xf32>
    %124 = arith.mulf %120, %123 : vector<2x128xf32>
    %125 = arith.mulf %122, %122 : vector<2x128xf32>
    %126 = arith.subf %124, %125 : vector<2x128xf32>
    %cst_49 = arith.constant 0.000000e+00 : f32
    %127 = vector.broadcast %cst_49 : f32 to vector<2x128xf32>
    %128 = arith.maximumf %126, %127 : vector<2x128xf32>
    %129 = vector.shape_cast %122 : vector<2x128xf32> to vector<2x1x128xf32>
    %130 = vector.broadcast %129 : vector<2x1x128xf32> to vector<2x16x128xf32>
    %131 = arith.subf %101, %130 : vector<2x16x128xf32>
    %132 = vector.shape_cast %128 : vector<2x128xf32> to vector<2x1x128xf32>
    %cst_50 = arith.constant 9.99999974E-6 : f32
    %133 = vector.broadcast %cst_50 : f32 to vector<2x1x128xf32>
    %134 = arith.addf %132, %133 : vector<2x1x128xf32>
    %135 = math.rsqrt %134 : vector<2x1x128xf32>
    %136 = vector.broadcast %135 : vector<2x1x128xf32> to vector<2x16x128xf32>
    %137 = arith.mulf %131, %136 : vector<2x16x128xf32>
    %138 = vector.shape_cast %137 : vector<2x16x128xf32> to vector<32x128xf32>
    %cst_51 = arith.constant 1.000000e-01 : f32
    %139 = vector.broadcast %cst_51 : f32 to vector<32x128xf32>
    %140 = arith.mulf %139, %138 : vector<32x128xf32>
    %141 = arith.addf %38, %140 : vector<32x128xf32>
    %c1_i32_52 = arith.constant 1 : i32
    %142 = tpu.dynamic_rotate %141 by %c1_i32_52 dim 0 : vector<32x128xf32>, i32 -> vector<32x128xf32>
    %cst_53 = arith.constant 0.000000e+00 : f32
    %143 = vector.broadcast %cst_53 : f32 to vector<32x128xf32>
    %144 = arith.select %18, %143, %142 : vector<32x128xi1>, vector<32x128xf32>
    %c31_i32_54 = arith.constant 31 : i32
    %145 = tpu.dynamic_rotate %141 by %c31_i32_54 dim 0 : vector<32x128xf32>, i32 -> vector<32x128xf32>
    %cst_55 = arith.constant 0.000000e+00 : f32
    %146 = vector.broadcast %cst_55 : f32 to vector<32x128xf32>
    %147 = arith.select %36, %146, %145 : vector<32x128xi1>, vector<32x128xf32>
    %148 = tpu.concatenate %144, %141, %147 in 1 : vector<32x128xf32>, vector<32x128xf32>, vector<32x128xf32> -> vector<32x384xf32>
    %149 = arith.truncf %148 : vector<32x384xf32> to vector<32x384xbf16>
    %c2 = arith.constant 2 : index
    %c0_56 = arith.constant 0 : index
    %c0_57 = arith.constant 0 : index
    %150 = vector.load %arg2[%c2, %c0_56, %c0_57] : memref<4x384x128xbf16, #tpu.memory_space<vmem>>, vector<1x384x128xbf16>
    %151 = vector.shape_cast %150 : vector<1x384x128xbf16> to vector<384x128xbf16>
    %cst_58 = arith.constant dense<0.000000e+00> : vector<32x128xf32>
    %152 = tpu.matmul %149, %151, %cst_58 {dimension_numbers = #tpu.dot_dimension_numbers<[1], [0], [0], [1], [0, 0, 1, 1], [], []>} : vector<32x384xbf16>, vector<384x128xbf16>, vector<32x128xf32> -> vector<32x128xf32>
    %153 = vector.shape_cast %152 : vector<32x128xf32> to vector<2x16x128xf32>
    %cst_59 = arith.constant dense<0.000000e+00> : vector<2x128xf32>
    %154 = vector.multi_reduction <add>, %153, %cst_59 [1] : vector<2x16x128xf32> to vector<2x128xf32>
    %155 = arith.mulf %153, %153 : vector<2x16x128xf32>
    %cst_60 = arith.constant dense<0.000000e+00> : vector<2x128xf32>
    %156 = vector.multi_reduction <add>, %155, %cst_60 [1] : vector<2x16x128xf32> to vector<2x128xf32>
    %c8_i32_61 = arith.constant 8 : i32
    %157 = tpu.dynamic_rotate %154 by %c8_i32_61 dim 1 : vector<2x128xf32>, i32 -> vector<2x128xf32>
    %158 = arith.addf %154, %157 : vector<2x128xf32>
    %c8_i32_62 = arith.constant 8 : i32
    %159 = tpu.dynamic_rotate %156 by %c8_i32_62 dim 1 : vector<2x128xf32>, i32 -> vector<2x128xf32>
    %160 = arith.addf %156, %159 : vector<2x128xf32>
    %c16_i32_63 = arith.constant 16 : i32
    %161 = tpu.dynamic_rotate %158 by %c16_i32_63 dim 1 : vector<2x128xf32>, i32 -> vector<2x128xf32>
    %162 = arith.addf %158, %161 : vector<2x128xf32>
    %c16_i32_64 = arith.constant 16 : i32
    %163 = tpu.dynamic_rotate %160 by %c16_i32_64 dim 1 : vector<2x128xf32>, i32 -> vector<2x128xf32>
    %164 = arith.addf %160, %163 : vector<2x128xf32>
    %c32_i32_65 = arith.constant 32 : i32
    %165 = tpu.dynamic_rotate %162 by %c32_i32_65 dim 1 : vector<2x128xf32>, i32 -> vector<2x128xf32>
    %166 = arith.addf %162, %165 : vector<2x128xf32>
    %c32_i32_66 = arith.constant 32 : i32
    %167 = tpu.dynamic_rotate %164 by %c32_i32_66 dim 1 : vector<2x128xf32>, i32 -> vector<2x128xf32>
    %168 = arith.addf %164, %167 : vector<2x128xf32>
    %c64_i32_67 = arith.constant 64 : i32
    %169 = tpu.dynamic_rotate %166 by %c64_i32_67 dim 1 : vector<2x128xf32>, i32 -> vector<2x128xf32>
    %170 = arith.addf %166, %169 : vector<2x128xf32>
    %c64_i32_68 = arith.constant 64 : i32
    %171 = tpu.dynamic_rotate %168 by %c64_i32_68 dim 1 : vector<2x128xf32>, i32 -> vector<2x128xf32>
    %172 = arith.addf %168, %171 : vector<2x128xf32>
    %cst_69 = arith.constant 3.906250e-03 : f32
    %173 = vector.broadcast %cst_69 : f32 to vector<2x128xf32>
    %174 = arith.mulf %170, %173 : vector<2x128xf32>
    %cst_70 = arith.constant 3.906250e-03 : f32
    %175 = vector.broadcast %cst_70 : f32 to vector<2x128xf32>
    %176 = arith.mulf %172, %175 : vector<2x128xf32>
    %177 = arith.mulf %174, %174 : vector<2x128xf32>
    %178 = arith.subf %176, %177 : vector<2x128xf32>
    %cst_71 = arith.constant 0.000000e+00 : f32
    %179 = vector.broadcast %cst_71 : f32 to vector<2x128xf32>
    %180 = arith.maximumf %178, %179 : vector<2x128xf32>
    %181 = vector.shape_cast %174 : vector<2x128xf32> to vector<2x1x128xf32>
    %182 = vector.broadcast %181 : vector<2x1x128xf32> to vector<2x16x128xf32>
    %183 = arith.subf %153, %182 : vector<2x16x128xf32>
    %184 = vector.shape_cast %180 : vector<2x128xf32> to vector<2x1x128xf32>
    %cst_72 = arith.constant 9.99999974E-6 : f32
    %185 = vector.broadcast %cst_72 : f32 to vector<2x1x128xf32>
    %186 = arith.addf %184, %185 : vector<2x1x128xf32>
    %187 = math.rsqrt %186 : vector<2x1x128xf32>
    %188 = vector.broadcast %187 : vector<2x1x128xf32> to vector<2x16x128xf32>
    %189 = arith.mulf %183, %188 : vector<2x16x128xf32>
    %190 = vector.shape_cast %189 : vector<2x16x128xf32> to vector<32x128xf32>
    %cst_73 = arith.constant 0.000000e+00 : f32
    %191 = vector.broadcast %cst_73 : f32 to vector<32x128xf32>
    %192 = arith.maximumf %190, %191 : vector<32x128xf32>
    %c1_i32_74 = arith.constant 1 : i32
    %193 = tpu.dynamic_rotate %192 by %c1_i32_74 dim 0 : vector<32x128xf32>, i32 -> vector<32x128xf32>
    %cst_75 = arith.constant 0.000000e+00 : f32
    %194 = vector.broadcast %cst_75 : f32 to vector<32x128xf32>
    %195 = arith.select %18, %194, %193 : vector<32x128xi1>, vector<32x128xf32>
    %c31_i32_76 = arith.constant 31 : i32
    %196 = tpu.dynamic_rotate %192 by %c31_i32_76 dim 0 : vector<32x128xf32>, i32 -> vector<32x128xf32>
    %cst_77 = arith.constant 0.000000e+00 : f32
    %197 = vector.broadcast %cst_77 : f32 to vector<32x128xf32>
    %198 = arith.select %36, %197, %196 : vector<32x128xi1>, vector<32x128xf32>
    %199 = tpu.concatenate %195, %192, %198 in 1 : vector<32x128xf32>, vector<32x128xf32>, vector<32x128xf32> -> vector<32x384xf32>
    %200 = arith.truncf %199 : vector<32x384xf32> to vector<32x384xbf16>
    %c3 = arith.constant 3 : index
    %c0_78 = arith.constant 0 : index
    %c0_79 = arith.constant 0 : index
    %201 = vector.load %arg2[%c3, %c0_78, %c0_79] : memref<4x384x128xbf16, #tpu.memory_space<vmem>>, vector<1x384x128xbf16>
    %202 = vector.shape_cast %201 : vector<1x384x128xbf16> to vector<384x128xbf16>
    %cst_80 = arith.constant dense<0.000000e+00> : vector<32x128xf32>
    %203 = tpu.matmul %200, %202, %cst_80 {dimension_numbers = #tpu.dot_dimension_numbers<[1], [0], [0], [1], [0, 0, 1, 1], [], []>} : vector<32x384xbf16>, vector<384x128xbf16>, vector<32x128xf32> -> vector<32x128xf32>
    %204 = vector.shape_cast %203 : vector<32x128xf32> to vector<2x16x128xf32>
    %cst_81 = arith.constant dense<0.000000e+00> : vector<2x128xf32>
    %205 = vector.multi_reduction <add>, %204, %cst_81 [1] : vector<2x16x128xf32> to vector<2x128xf32>
    %206 = arith.mulf %204, %204 : vector<2x16x128xf32>
    %cst_82 = arith.constant dense<0.000000e+00> : vector<2x128xf32>
    %207 = vector.multi_reduction <add>, %206, %cst_82 [1] : vector<2x16x128xf32> to vector<2x128xf32>
    %c8_i32_83 = arith.constant 8 : i32
    %208 = tpu.dynamic_rotate %205 by %c8_i32_83 dim 1 : vector<2x128xf32>, i32 -> vector<2x128xf32>
    %209 = arith.addf %205, %208 : vector<2x128xf32>
    %c8_i32_84 = arith.constant 8 : i32
    %210 = tpu.dynamic_rotate %207 by %c8_i32_84 dim 1 : vector<2x128xf32>, i32 -> vector<2x128xf32>
    %211 = arith.addf %207, %210 : vector<2x128xf32>
    %c16_i32_85 = arith.constant 16 : i32
    %212 = tpu.dynamic_rotate %209 by %c16_i32_85 dim 1 : vector<2x128xf32>, i32 -> vector<2x128xf32>
    %213 = arith.addf %209, %212 : vector<2x128xf32>
    %c16_i32_86 = arith.constant 16 : i32
    %214 = tpu.dynamic_rotate %211 by %c16_i32_86 dim 1 : vector<2x128xf32>, i32 -> vector<2x128xf32>
    %215 = arith.addf %211, %214 : vector<2x128xf32>
    %c32_i32_87 = arith.constant 32 : i32
    %216 = tpu.dynamic_rotate %213 by %c32_i32_87 dim 1 : vector<2x128xf32>, i32 -> vector<2x128xf32>
    %217 = arith.addf %213, %216 : vector<2x128xf32>
    %c32_i32_88 = arith.constant 32 : i32
    %218 = tpu.dynamic_rotate %215 by %c32_i32_88 dim 1 : vector<2x128xf32>, i32 -> vector<2x128xf32>
    %219 = arith.addf %215, %218 : vector<2x128xf32>
    %c64_i32_89 = arith.constant 64 : i32
    %220 = tpu.dynamic_rotate %217 by %c64_i32_89 dim 1 : vector<2x128xf32>, i32 -> vector<2x128xf32>
    %221 = arith.addf %217, %220 : vector<2x128xf32>
    %c64_i32_90 = arith.constant 64 : i32
    %222 = tpu.dynamic_rotate %219 by %c64_i32_90 dim 1 : vector<2x128xf32>, i32 -> vector<2x128xf32>
    %223 = arith.addf %219, %222 : vector<2x128xf32>
    %cst_91 = arith.constant 3.906250e-03 : f32
    %224 = vector.broadcast %cst_91 : f32 to vector<2x128xf32>
    %225 = arith.mulf %221, %224 : vector<2x128xf32>
    %cst_92 = arith.constant 3.906250e-03 : f32
    %226 = vector.broadcast %cst_92 : f32 to vector<2x128xf32>
    %227 = arith.mulf %223, %226 : vector<2x128xf32>
    %228 = arith.mulf %225, %225 : vector<2x128xf32>
    %229 = arith.subf %227, %228 : vector<2x128xf32>
    %cst_93 = arith.constant 0.000000e+00 : f32
    %230 = vector.broadcast %cst_93 : f32 to vector<2x128xf32>
    %231 = arith.maximumf %229, %230 : vector<2x128xf32>
    %232 = vector.shape_cast %225 : vector<2x128xf32> to vector<2x1x128xf32>
    %233 = vector.broadcast %232 : vector<2x1x128xf32> to vector<2x16x128xf32>
    %234 = arith.subf %204, %233 : vector<2x16x128xf32>
    %235 = vector.shape_cast %231 : vector<2x128xf32> to vector<2x1x128xf32>
    %cst_94 = arith.constant 9.99999974E-6 : f32
    %236 = vector.broadcast %cst_94 : f32 to vector<2x1x128xf32>
    %237 = arith.addf %235, %236 : vector<2x1x128xf32>
    %238 = math.rsqrt %237 : vector<2x1x128xf32>
    %239 = vector.broadcast %238 : vector<2x1x128xf32> to vector<2x16x128xf32>
    %240 = arith.mulf %234, %239 : vector<2x16x128xf32>
    %241 = vector.shape_cast %240 : vector<2x16x128xf32> to vector<32x128xf32>
    %cst_95 = arith.constant 1.000000e-01 : f32
    %242 = vector.broadcast %cst_95 : f32 to vector<32x128xf32>
    %243 = arith.mulf %242, %241 : vector<32x128xf32>
    %244 = arith.addf %141, %243 : vector<32x128xf32>
    %245 = vector.shape_cast %244 : vector<32x128xf32> to vector<2x16x128xf32>
    %c0_96 = arith.constant 0 : index
    %c0_97 = arith.constant 0 : index
    %c0_98 = arith.constant 0 : index
    %246 = vector.load %arg3[%c0_96, %c0_97, %c0_98] : memref<2x16x128xf32, #tpu.memory_space<vmem>>, vector<2x16x128xf32>
    tpu.vector_store %arg3[%c0_96, %c0_97, %c0_98], %245 {strides = array<i32>} : memref<2x16x128xf32, #tpu.memory_space<vmem>>, vector<2x16x128xf32>,
    return
  }
  func.func @transform_0(%arg0: i32) -> (i32, i32, i32) {
    %c0_i32 = arith.constant 0 : i32
    %c0_i32_0 = arith.constant 0 : i32
    %c0_i32_1 = arith.constant 0 : i32
    return %arg0, %c0_i32, %c0_i32_0 : i32, i32, i32
  }
  func.func @transform_1(%arg0: i32) -> (i32, i32, i32) {
    %c0_i32 = arith.constant 0 : i32
    %c0_i32_0 = arith.constant 0 : i32
    %c0_i32_1 = arith.constant 0 : i32
    %c0_i32_2 = arith.constant 0 : i32
    return %c0_i32, %c0_i32_0, %c0_i32_1 : i32, i32, i32
  }
  func.func @transform_2(%arg0: i32) -> (i32, i32, i32) {
    %c0_i32 = arith.constant 0 : i32
    %c0_i32_0 = arith.constant 0 : i32
    %c0_i32_1 = arith.constant 0 : i32
    return %arg0, %c0_i32, %c0_i32_0 : i32, i32, i32
  }
}

</mosaic_0001>

<llo_original>
// kernel: resblocks_forward.1
$region0: #{resblocks_forward.1}
  #allocation0 [shape = 'u32[]', space=smem, size = 0x4, offset = 0x4, fixed_abs, tag = 'smem constant byte address 0x4 - core index']
  #allocation1 [shape = 'u32[144,128]{1,0:T(1,128)}', space=vmem, size = 0x12000, scoped, tag = 'internal scratch']
  %s0 = inlined_call_operand.vmem [shape: f32[2,16,128], index: 0, kind: input, shape index: {}, may-alias: {0,2}]
  %s1 = inlined_call_operand.vmem [shape: bf16[4,384,128], index: 1, kind: input, shape index: {}]
  %s2 = inlined_call_operand.vmem [shape: f32[2,16,128], index: 2, kind: output, shape index: {}, may-alias: {0,2}]
  %s3 = sld [smem:[#allocation0]]
  $region18: #{resblocks_forward.1} parent=0
    _
  %s5 = ssub.s32 1, %s3
  %s6 = scalar_select 0, %s5, %s3
  // Predicated region
  $region2: #{resblocks_forward.1} parent=0 // pred_check
    _
  $region3: #{resblocks_forward.1} parent=0 // pred_check_branch
    %8 = sbr.rel (0) target = $region5
  $region4: #{resblocks_forward.1} parent=0 // pred_region
    _
  $region5: #{resblocks_forward.1} parent=0 // pred_fallthru
    _
  // Predicated region
  $region6: #{resblocks_forward.1} parent=0 // pred_check
    _
  $region7: #{resblocks_forward.1} parent=0 // pred_check_branch
    %10 = sbr.rel (0) target = $region9
  $region8: #{resblocks_forward.1} parent=0 // pred_region
    _
  $region9: #{resblocks_forward.1} parent=0 // pred_fallthru
    _
  %v12 = vlaneseq
  %v13 = vshrl.u32 %v12, 7
  %v14 = vadd.s32 %v13, 8
  %v15 = vadd.s32 %v13, 16
  %v16 = vadd.s32 %v13, 24
  %vm17 = vcmp.lt.s32.totalorder %v13, 0
  %v18 = vsub.s32 0, %v13
  %v19 = vsel %vm17, %v18, %v13
  %v20 = vshrl.u32 %v19, 4
  %v21 = vand.u32 %v19, 15
  %v22 = vsub.s32 0, %v21
  %v23 = vsel %vm17, %v22, %v21
  %vm24 = vcmp.lt.s32.totalorder %v14, 0
  %v25 = vsub.s32 0, %v14
  %v26 = vsel %vm24, %v25, %v14
  %v27 = vshrl.u32 %v26, 4
  %v28 = vand.u32 %v26, 15
  %v29 = vsub.s32 0, %v28
  %v30 = vsel %vm24, %v29, %v28
  %vm31 = vcmp.lt.s32.totalorder %v15, 0
  %v32 = vsub.s32 0, %v15
  %v33 = vsel %vm31, %v32, %v15
  %v34 = vshrl.u32 %v33, 4
  %v35 = vand.u32 %v33, 15
  %v36 = vsub.s32 0, %v35
  %v37 = vsel %vm31, %v36, %v35
  %vm38 = vcmp.lt.s32.totalorder %v16, 0
  %v39 = vsub.s32 0, %v16
  %v40 = vsel %vm38, %v39, %v16
  %v41 = vshrl.u32 %v40, 4
  %v42 = vand.u32 %v40, 15
  %v43 = vsub.s32 0, %v42
  %v44 = vsel %vm38, %v43, %v42
  %vm45 = vcmp.ne.s32.totalorder %v23, 0
  %vm46 = vcmp.ne.s32.totalorder %v30, 0
  %vm47 = vcmp.ne.s32.totalorder %v37, 0
  %vm48 = vcmp.ne.s32.totalorder %v44, 0
  %vm49 = vcmp.lt.s32.totalorder %v23, 0
  %vm50 = vcmp.lt.s32.totalorder %v30, 0
  %vm51 = vcmp.lt.s32.totalorder %v37, 0
  %vm52 = vcmp.lt.s32.totalorder %v44, 0
  %vm53 = vmand %vm49, %vm45
  %vm54 = vmand %vm50, %vm46
  %vm55 = vmand %vm51, %vm47
  %vm56 = vmand %vm52, %vm48
  %v57 = vadd.s32 %v23, 16
  %v58 = vadd.s32 %v30, 16
  %v59 = vadd.s32 %v37, 16
  %v60 = vadd.s32 %v44, 16
  %v61 = vsel %vm53, %v57, %v23
  %v62 = vsel %vm54, %v58, %v30
  %v63 = vsel %vm55, %v59, %v37
  %v64 = vsel %vm56, %v60, %v44
  %vm65 = vcmp.eq.s32.totalorder %v61, 0
  %vm66 = vcmp.eq.s32.totalorder %v62, 0
  %vm67 = vcmp.eq.s32.totalorder %v63, 0
  %vm68 = vcmp.eq.s32.totalorder %v64, 0
  %vm69 = vcmp.eq.s32.totalorder %v61, 15
  %vm70 = vcmp.eq.s32.totalorder %v62, 15
  %vm71 = vcmp.eq.s32.totalorder %v63, 15
  %vm72 = vcmp.eq.s32.totalorder %v64, 15
  %v73 = vld [vmem:[%s0] sm:$0xff]
  %v74 = vld [vmem:[%s0 + $0x8] sm:$0xff]
  %v75 = vld [vmem:[%s0 + $0x10] sm:$0xff]
  %v76 = vld [vmem:[%s0 + $0x18] sm:$0xff]
  %v77 = vrot.slane %v73, 7
  %v78 = vrot.slane %v74, 7
  %v79 = vrot.slane %v75, 7
  %v80 = vrot.slane %v76, 7
  %vm81 = vcmp.lt.s32.totalorder %v13, 1
  %v82 = vsel %vm81, %v79, %v80
  %v83 = vsel %vm81, %v78, %v79
  %v84 = vsel %vm81, %v77, %v78
  %v85 = vsel %vm81, %v80, %v77
  %v86 = vsel %vm65, 0.0, %v85
  %v87 = vsel %vm66, 0.0, %v84
  %v88 = vsel %vm67, 0.0, %v83
  %v89 = vsel %vm68, 0.0, %v82
  %v90 = vrot.slane %v73, 1
  %v91 = vrot.slane %v74, 1
  %v92 = vrot.slane %v75, 1
  %v93 = vrot.slane %v76, 1
  %vm94 = vcmp.lt.s32.totalorder %v13, 7
  %v95 = vsel %vm94, %v92, %v93
  %v96 = vsel %vm94, %v91, %v92
  %v97 = vsel %vm94, %v90, %v91
  %v98 = vsel %vm94, %v93, %v90
  %v99 = vsel %vm69, 0.0, %v97
  %v100 = vsel %vm70, 0.0, %v96
  %v101 = vsel %vm71, 0.0, %v95
  %v102 = vsel %vm72, 0.0, %v98
  %v103 = vpack.c.bf16 %v87, %v86
  %v104 = vpack.c.bf16 %v74, %v73
  %v105 = vpack.c.bf16 %v100, %v99
  %v106 = vpack.c.bf16 %v89, %v88
  %v107 = vpack.c.bf16 %v76, %v75
  %v108 = vpack.c.bf16 %v102, %v101
  %v109 = vld [vmem:[%s1] sm:$0xf]
  %v110 = vld [vmem:[%s1 + $0x4] sm:$0xf]
  %v111 = vld [vmem:[%s1 + $0x8] sm:$0xf]
  %v112 = vld [vmem:[%s1 + $0xc] sm:$0xf]
  %v113 = vld [vmem:[%s1 + $0x10] sm:$0xf]
  %v114 = vld [vmem:[%s1 + $0x14] sm:$0xf]
  %v115 = vld [vmem:[%s1 + $0x18] sm:$0xf]
  %v116 = vld [vmem:[%s1 + $0x1c] sm:$0xf]
  %v117 = vld [vmem:[%s1 + $0x20] sm:$0xf]
  %v118 = vld [vmem:[%s1 + $0x24] sm:$0xf]
  %v119 = vld [vmem:[%s1 + $0x28] sm:$0xf]
  %v120 = vld [vmem:[%s1 + $0x2c] sm:$0xf]
  %v121 = vld [vmem:[%s1 + $0x30] sm:$0xf]
  %v122 = vld [vmem:[%s1 + $0x34] sm:$0xf]
  %v123 = vld [vmem:[%s1 + $0x38] sm:$0xf]
  %v124 = vld [vmem:[%s1 + $0x3c] sm:$0xf]
  %v125 = vld [vmem:[%s1 + $0x40] sm:$0xf]
  %v126 = vld [vmem:[%s1 + $0x44] sm:$0xf]
  %v127 = vld [vmem:[%s1 + $0x48] sm:$0xf]
  %v128 = vld [vmem:[%s1 + $0x4c] sm:$0xf]
  %v129 = vld [vmem:[%s1 + $0x50] sm:$0xf]
  %v130 = vld [vmem:[%s1 + $0x54] sm:$0xf]
  %v131 = vld [vmem:[%s1 + $0x58] sm:$0xf]
  %v132 = vld [vmem:[%s1 + $0x5c] sm:$0xf]
  %v133 = vld [vmem:[%s1 + $0x60] sm:$0xf]
  %v134 = vld [vmem:[%s1 + $0x64] sm:$0xf]
  %v135 = vld [vmem:[%s1 + $0x68] sm:$0xf]
  %v136 = vld [vmem:[%s1 + $0x6c] sm:$0xf]
  %v137 = vld [vmem:[%s1 + $0x70] sm:$0xf]
  %v138 = vld [vmem:[%s1 + $0x74] sm:$0xf]
  %v139 = vld [vmem:[%s1 + $0x78] sm:$0xf]
  %v140 = vld [vmem:[%s1 + $0x7c] sm:$0xf]
  %v141 = vld [vmem:[%s1 + $0x80] sm:$0xf]
  %v142 = vld [vmem:[%s1 + $0x84] sm:$0xf]
  %v143 = vld [vmem:[%s1 + $0x88] sm:$0xf]
  %v144 = vld [vmem:[%s1 + $0x8c] sm:$0xf]
  %v145 = vld [vmem:[%s1 + $0x90] sm:$0xf]
  %v146 = vld [vmem:[%s1 + $0x94] sm:$0xf]
  %v147 = vld [vmem:[%s1 + $0x98] sm:$0xf]
  %v148 = vld [vmem:[%s1 + $0x9c] sm:$0xf]
  %v149 = vld [vmem:[%s1 + $0xa0] sm:$0xf]
  %v150 = vld [vmem:[%s1 + $0xa4] sm:$0xf]
  %v151 = vld [vmem:[%s1 + $0xa8] sm:$0xf]
  %v152 = vld [vmem:[%s1 + $0xac] sm:$0xf]
  %v153 = vld [vmem:[%s1 + $0xb0] sm:$0xf]
  %v154 = vld [vmem:[%s1 + $0xb4] sm:$0xf]
  %v155 = vld [vmem:[%s1 + $0xb8] sm:$0xf]
  %v156 = vld [vmem:[%s1 + $0xbc] sm:$0xf]
  %v205 = vunpack.c.l.b16 %v109
  %v206 = vunpack.c.l.b16 %v110
  %v207 = vunpack.c.l.b16 %v111
  %v208 = vunpack.c.l.b16 %v112
  %v209 = vunpack.c.l.b16 %v113
  %v210 = vunpack.c.l.b16 %v114
  %v211 = vunpack.c.l.b16 %v115
  %v212 = vunpack.c.l.b16 %v116
  %v213 = vunpack.c.l.b16 %v117
  %v214 = vunpack.c.l.b16 %v118
  %v215 = vunpack.c.l.b16 %v119
  %v216 = vunpack.c.l.b16 %v120
  %v217 = vunpack.c.l.b16 %v121
  %v218 = vunpack.c.l.b16 %v122
  %v219 = vunpack.c.l.b16 %v123
  %v220 = vunpack.c.l.b16 %v124
  %v221 = vunpack.c.l.b16 %v125
  %v222 = vunpack.c.l.b16 %v126
  %v223 = vunpack.c.l.b16 %v127
  %v224 = vunpack.c.l.b16 %v128
  %v225 = vunpack.c.l.b16 %v129
  %v226 = vunpack.c.l.b16 %v130
  %v227 = vunpack.c.l.b16 %v131
  %v228 = vunpack.c.l.b16 %v132
  %v229 = vunpack.c.l.b16 %v133
  %v230 = vunpack.c.l.b16 %v134
  %v231 = vunpack.c.l.b16 %v135
  %v232 = vunpack.c.l.b16 %v136
  %v233 = vunpack.c.l.b16 %v137
  %v234 = vunpack.c.l.b16 %v138
  %v235 = vunpack.c.l.b16 %v139
  %v236 = vunpack.c.l.b16 %v140
  %v237 = vunpack.c.l.b16 %v141
  %v238 = vunpack.c.l.b16 %v142
  %v239 = vunpack.c.l.b16 %v143
  %v240 = vunpack.c.l.b16 %v144
  %v241 = vunpack.c.l.b16 %v145
  %v242 = vunpack.c.l.b16 %v146
  %v243 = vunpack.c.l.b16 %v147
  %v244 = vunpack.c.l.b16 %v148
  %v245 = vunpack.c.l.b16 %v149
  %v246 = vunpack.c.l.b16 %v150
  %v247 = vunpack.c.l.b16 %v151
  %v248 = vunpack.c.l.b16 %v152
  %v249 = vunpack.c.l.b16 %v153
  %v250 = vunpack.c.l.b16 %v154
  %v251 = vunpack.c.l.b16 %v155
  %v252 = vunpack.c.l.b16 %v156
  %v253 = vpack.c.b16 %v206, %v205
  %v254 = vpack.c.b16 %v208, %v207
  %v255 = vpack.c.b16 %v210, %v209
  %v256 = vpack.c.b16 %v212, %v211
  %v257 = vpack.c.b16 %v214, %v213
  %v258 = vpack.c.b16 %v216, %v215
  %v259 = vpack.c.b16 %v218, %v217
  %v260 = vpack.c.b16 %v220, %v219
  %v261 = vpack.c.b16 %v222, %v221
  %v262 = vpack.c.b16 %v224, %v223
  %v263 = vpack.c.b16 %v226, %v225
  %v264 = vpack.c.b16 %v228, %v227
  %v265 = vpack.c.b16 %v230, %v229
  %v266 = vpack.c.b16 %v232, %v231
  %v267 = vpack.c.b16 %v234, %v233
  %v268 = vpack.c.b16 %v236, %v235
  %v269 = vpack.c.b16 %v238, %v237
  %v270 = vpack.c.b16 %v240, %v239
  %v271 = vpack.c.b16 %v242, %v241
  %v272 = vpack.c.b16 %v244, %v243
  %v273 = vpack.c.b16 %v246, %v245
  %v274 = vpack.c.b16 %v248, %v247
  %v275 = vpack.c.b16 %v250, %v249
  %v276 = vpack.c.b16 %v252, %v251
  %301 = vmatprep.subr.bf16.mxu0 0
  %302 = vmatpush1.bf16.msra.mxu0 %v253
  %303 = vmatprep.subr.bf16.mxu0 0
  %304 = vmatpush1.bf16.msra.mxu0 %v254
  %305 = vmatprep.subr.bf16.mxu0 0
  %306 = vmatpush1.bf16.msra.mxu0 %v255
  %307 = vmatprep.subr.bf16.mxu0 0
  %308 = vmatpush1.bf16.msra.mxu0 %v256
  %309 = vmatprep.subr.bf16.mxu0 0
  %310 = vmatpush1.bf16.msra.mxu0 %v257
  %311 = vmatprep.subr.bf16.mxu0 0
  %312 = vmatpush1.bf16.msra.mxu0 %v258
  %313 = vmatprep.subr.bf16.mxu0 0
  %314 = vmatpush1.bf16.msra.mxu0 %v259
  %315 = vmatprep.subr.bf16.mxu0 0
  %316 = vmatpush1.bf16.msra.mxu0 %v260
  %317 = vmatprep.subr.bf16.mxu0 0
  %318 = vmatpush1.bf16.msra.mxu0 %v261
  %319 = vmatprep.subr.bf16.mxu0 0
  %320 = vmatpush1.bf16.msra.mxu0 %v262
  %321 = vmatprep.subr.bf16.mxu0 0
  %322 = vmatpush1.bf16.msra.mxu0 %v263
  %323 = vmatprep.subr.bf16.mxu0 0
  %324 = vmatpush1.bf16.msra.mxu0 %v264
  %325 = vmatprep.subr.bf16.mxu0 0
  %326 = vmatpush1.bf16.msra.mxu0 %v265
  %327 = vmatprep.subr.bf16.mxu0 0
  %328 = vmatpush1.bf16.msra.mxu0 %v266
  %329 = vmatprep.subr.bf16.mxu0 0
  %330 = vmatpush1.bf16.msra.mxu0 %v267
  %331 = vmatprep.subr.bf16.mxu0 0
  %332 = vmatpush1.bf16.msra.mxu0 %v268
  %333 = vmatprep.mubr.bf16.mxu0 %v104
  %334 = vmatmul.mubr.bf16.gmra.mrb[0].mxu0 %v103
  %v335 = vpop.f32.mrb[0].mxu0
  %v336 = vadd.f32 0.0, %v335
  %v337 = vpop.f32.mrb[0].mxu0
  %v338 = vpop.f32.mrb[0].mxu0
  %v339 = vadd.f32 0.0, %v338
  %v340 = vpop.f32.mrb[0].mxu0
  %341 = vmatprep.mubr.bf16.mxu0 %v107
  %342 = vmatmul.mubr.bf16.gmra.mrb[0].mxu0 %v106
  %v343 = vpop.f32.mrb[0].mxu0
  %v344 = vadd.f32 0.0, %v343
  %v345 = vpop.f32.mrb[0].mxu0
  %v346 = vpop.f32.mrb[0].mxu0
  %v347 = vadd.f32 0.0, %v346
  %v348 = vpop.f32.mrb[0].mxu0
  %349 = vdwg.mxu0
  %350 = vmatprep.subr.bf16.mxu0 0
  %351 = vmatpush1.bf16.msra.mxu0 %v269
  %352 = vmatprep.subr.bf16.mxu0 0
  %353 = vmatpush1.bf16.msra.mxu0 %v270
  %354 = vmatprep.subr.bf16.mxu0 0
  %355 = vmatpush1.bf16.msra.mxu0 %v271
  %356 = vmatprep.subr.bf16.mxu0 0
  %357 = vmatpush1.bf16.msra.mxu0 %v272
  %358 = vmatprep.subr.bf16.mxu0 0
  %359 = vmatpush1.bf16.msra.mxu0 %v273
  %360 = vmatprep.subr.bf16.mxu0 0
  %361 = vmatpush1.bf16.msra.mxu0 %v274
  %362 = vmatprep.subr.bf16.mxu0 0
  %363 = vmatpush1.bf16.msra.mxu0 %v275
  %364 = vmatprep.subr.bf16.mxu0 0
  %365 = vmatpush1.bf16.msra.mxu0 %v276
  %366 = vmatprep.subr.bf16.mxu0 0
  %367 = vmatpush1.bf16.msra.mxu0 0
  %368 = vmatprep.subr.bf16.mxu0 0
  %369 = vmatpush1.bf16.msra.mxu0 0
  %370 = vmatprep.subr.bf16.mxu0 0
  %371 = vmatpush1.bf16.msra.mxu0 0
  %372 = vmatprep.subr.bf16.mxu0 0
  %373 = vmatpush1.bf16.msra.mxu0 0
  %374 = vmatprep.subr.bf16.mxu0 0
  %375 = vmatpush1.bf16.msra.mxu0 0
  %376 = vmatprep.subr.bf16.mxu0 0
  %377 = vmatpush1.bf16.msra.mxu0 0
  %378 = vmatprep.subr.bf16.mxu0 0
  %379 = vmatpush1.bf16.msra.mxu0 0
  %380 = vmatprep.subr.bf16.mxu0 0
  %381 = vmatpush1.bf16.msra.mxu0 0
  %382 = vmatprep.mubr.bf16.mxu0 0
  %383 = vmatmul.mubr.bf16.gmra.mrb[0].mxu0 %v105
  %v384 = vpop.f32.mrb[0].mxu0
  %v385 = vadd.f32 %v336, %v384
  %v386 = vpop.f32.mrb[0].mxu0
  %v387 = vpop.f32.mrb[0].mxu0
  %v388 = vadd.f32 %v339, %v387
  %v389 = vpop.f32.mrb[0].mxu0
  %390 = vmatprep.mubr.bf16.mxu0 0
  %391 = vmatmul.mubr.bf16.gmra.mrb[0].mxu0 %v108
  %v392 = vpop.f32.mrb[0].mxu0
  %v393 = vadd.f32 %v344, %v392
  %v394 = vpop.f32.mrb[0].mxu0
  %v395 = vpop.f32.mrb[0].mxu0
  %v396 = vadd.f32 %v347, %v395
  %v397 = vpop.f32.mrb[0].mxu0
  %398 = vdwg.mxu0
  %v399 = vadd.f32 %v385, %v388
  %v400 = vrot.slane %v399, 4
  %v401 = vadd.f32 %v399, %v400
  %v402 = vrot.slane %v401, 2
  %v403 = vadd.f32 %v401, %v402
  %v404 = vrot.slane %v403, 1
  %v405 = vadd.f32 %v403, %v404
  %v406 = vadd.f32 %v393, %v396
  %v407 = vrot.slane %v406, 4
  %v408 = vadd.f32 %v406, %v407
  %v409 = vrot.slane %v408, 2
  %v410 = vadd.f32 %v408, %v409
  %v411 = vrot.slane %v410, 1
  %v412 = vadd.f32 %v410, %v411
  %v413 = vmul.f32 %v385, %v385
  %v414 = vmul.f32 %v388, %v388
  %v415 = vmul.f32 %v393, %v393
  %v416 = vmul.f32 %v396, %v396
  %v417 = vadd.f32 %v413, %v414
  %v418 = vrot.slane %v417, 4
  %v419 = vadd.f32 %v417, %v418
  %v420 = vrot.slane %v419, 2
  %v421 = vadd.f32 %v419, %v420
  %v422 = vrot.slane %v421, 1
  %v423 = vadd.f32 %v421, %v422
  %v424 = vadd.f32 %v415, %v416
  %v425 = vrot.slane %v424, 4
  %v426 = vadd.f32 %v424, %v425
  %v427 = vrot.slane %v426, 2
  %v428 = vadd.f32 %v426, %v427
  %v429 = vrot.slane %v428, 1
  %v430 = vadd.f32 %v428, %v429
  %vm433 = vcmask 1041409
  %v434 = vsel %vm433, %v412, %v405
  %436 = vrot.lane.b32.xlu0 %v434, 8
  %v437 = vpop.permute.xlu0 %436
  %v439 = vrot.slane %v437, 1
  %v442 = vadd.f32 %v405, %v437
  %v443 = vadd.f32 %v412, %v439
  %v446 = vsel %vm433, %v430, %v423
  %448 = vrot.lane.b32.xlu0 %v446, 8
  %v449 = vpop.permute.xlu0 %448
  %v451 = vrot.slane %v449, 1
  %v454 = vadd.f32 %v423, %v449
  %v455 = vadd.f32 %v430, %v451
  %v458 = vrot.slane %v443, 7
  %v459 = vsel %vm433, %v458, %v442
  %461 = vrot.lane.b32.xlu0 %v459, 16
  %v462 = vpop.permute.xlu0 %461
  %v464 = vrot.slane %v462, 1
  %v467 = vadd.f32 %v442, %v462
  %v468 = vadd.f32 %v443, %v464
  %v471 = vrot.slane %v455, 7
  %v472 = vsel %vm433, %v471, %v454
  %474 = vrot.lane.b32.xlu0 %v472, 16
  %v475 = vpop.permute.xlu0 %474
  %v477 = vrot.slane %v475, 1
  %v480 = vadd.f32 %v454, %v475
  %v481 = vadd.f32 %v455, %v477
  %v484 = vrot.slane %v468, 7
  %v485 = vsel %vm433, %v484, %v467
  %487 = vrot.lane.b32.xlu0 %v485, 32
  %v488 = vpop.permute.xlu0 %487
  %v490 = vrot.slane %v488, 1
  %v493 = vadd.f32 %v467, %v488
  %v494 = vadd.f32 %v468, %v490
  %v497 = vrot.slane %v481, 7
  %v498 = vsel %vm433, %v497, %v480
  %500 = vrot.lane.b32.xlu0 %v498, 32
  %v501 = vpop.permute.xlu0 %500
  %v503 = vrot.slane %v501, 1
  %v506 = vadd.f32 %v480, %v501
  %v507 = vadd.f32 %v481, %v503
  %v510 = vrot.slane %v494, 7
  %v511 = vsel %vm433, %v510, %v493
  %513 = vrot.lane.b32.xlu0 %v511, 64
  %v514 = vpop.permute.xlu0 %513
  %v516 = vrot.slane %v514, 1
  %v519 = vadd.f32 %v493, %v514
  %v520 = vadd.f32 %v494, %v516
  %v523 = vrot.slane %v507, 7
  %v524 = vsel %vm433, %v523, %v506
  %526 = vrot.lane.b32.xlu0 %v524, 64
  %v527 = vpop.permute.xlu0 %526
  %v529 = vrot.slane %v527, 1
  %v532 = vadd.f32 %v506, %v527
  %v533 = vadd.f32 %v507, %v529
  %v534 = vmul.f32 %v519, 0.00390625
  %v535 = vmul.f32 %v520, 0.00390625
  %v536 = vmul.f32 %v532, 0.00390625
  %v537 = vmul.f32 %v533, 0.00390625
  %v538 = vmul.f32 %v534, %v534
  %v539 = vmul.f32 %v535, %v535
  %v540 = vsub.f32 %v536, %v538
  %v541 = vsub.f32 %v537, %v539
  %v542 = vmax.f32 %v540, 0.0
  %v543 = vmax.f32 %v541, 0.0
  %v544 = vlaneseq
  %v545 = vshrl.u32 %v544, 7
  %v546 = vsub.s32 0, %v545
  %v547 = vrot.slane %v534, %v546
  %v548 = vlaneseq
  %v549 = vshrl.u32 %v548, 7
  %v550 = vsub.s32 0, %v549
  %v551 = vrot.slane %v535, %v550
  %v552 = vsub.f32 %v385, %v547
  %v553 = vsub.f32 %v388, %v547
  %v554 = vsub.f32 %v393, %v551
  %v555 = vsub.f32 %v396, %v551
  %v556 = vadd.f32 %v542, 1e-05
  %v557 = vadd.f32 %v543, 1e-05
  %v558 = vrsqrt.pop %v556
  %v559 = vrsqrt.pop %v557
  %v560 = vlaneseq
  %v561 = vshrl.u32 %v560, 7
  %v562 = vsub.s32 0, %v561
  %v563 = vrot.slane %v558, %v562
  %v564 = vlaneseq
  %v565 = vshrl.u32 %v564, 7
  %v566 = vsub.s32 0, %v565
  %v567 = vrot.slane %v559, %v566
  %v568 = vmul.f32 %v552, %v563
  %v569 = vmul.f32 %v553, %v563
  %v570 = vmul.f32 %v554, %v567
  %v571 = vmul.f32 %v555, %v567
  %v572 = vmax.f32 %v568, 0.0
  %v573 = vmax.f32 %v569, 0.0
  %v574 = vmax.f32 %v570, 0.0
  %v575 = vmax.f32 %v571, 0.0
  %v576 = vrot.slane %v572, 7
  %v577 = vrot.slane %v573, 7
  %v578 = vrot.slane %v574, 7
  %v579 = vrot.slane %v575, 7
  %v580 = vsel %vm81, %v578, %v579
  %v581 = vsel %vm81, %v577, %v578
  %v582 = vsel %vm81, %v576, %v577
  %v583 = vsel %vm81, %v579, %v576
  %v584 = vsel %vm65, 0.0, %v583
  %v585 = vsel %vm66, 0.0, %v582
  %v586 = vsel %vm67, 0.0, %v581
  %v587 = vsel %vm68, 0.0, %v580
  %v588 = vrot.slane %v572, 1
  %v589 = vrot.slane %v573, 1
  %v590 = vrot.slane %v574, 1
  %v591 = vrot.slane %v575, 1
  %v592 = vsel %vm94, %v590, %v591
  %v593 = vsel %vm94, %v589, %v590
  %v594 = vsel %vm94, %v588, %v589
  %v595 = vsel %vm94, %v591, %v588
  %v596 = vsel %vm69, 0.0, %v594
  %v597 = vsel %vm70, 0.0, %v593
  %v598 = vsel %vm71, 0.0, %v592
  %v599 = vsel %vm72, 0.0, %v595
  %v600 = vpack.c.bf16 %v585, %v584
  %v601 = vpack.c.bf16 %v573, %v572
  %v602 = vpack.c.bf16 %v597, %v596
  %v603 = vpack.c.bf16 %v587, %v586
  %v604 = vpack.c.bf16 %v575, %v574
  %v605 = vpack.c.bf16 %v599, %v598
  %s606 = scalar_lea.vmem %s1, 192
  %v607 = vld [vmem:[%s606] sm:$0xf]
  %v608 = vld [vmem:[%s606 + $0x4] sm:$0xf]
  %v609 = vld [vmem:[%s606 + $0x8] sm:$0xf]
  %v610 = vld [vmem:[%s606 + $0xc] sm:$0xf]
  %v611 = vld [vmem:[%s606 + $0x10] sm:$0xf]
  %v612 = vld [vmem:[%s606 + $0x14] sm:$0xf]
  %v613 = vld [vmem:[%s606 + $0x18] sm:$0xf]
  %v614 = vld [vmem:[%s606 + $0x1c] sm:$0xf]
  %v615 = vld [vmem:[%s606 + $0x20] sm:$0xf]
  %v616 = vld [vmem:[%s606 + $0x24] sm:$0xf]
  %v617 = vld [vmem:[%s606 + $0x28] sm:$0xf]
  %v618 = vld [vmem:[%s606 + $0x2c] sm:$0xf]
  %v619 = vld [vmem:[%s606 + $0x30] sm:$0xf]
  %v620 = vld [vmem:[%s606 + $0x34] sm:$0xf]
  %v621 = vld [vmem:[%s606 + $0x38] sm:$0xf]
  %v622 = vld [vmem:[%s606 + $0x3c] sm:$0xf]
  %v623 = vld [vmem:[%s606 + $0x40] sm:$0xf]
  %v624 = vld [vmem:[%s606 + $0x44] sm:$0xf]
  %v625 = vld [vmem:[%s606 + $0x48] sm:$0xf]
  %v626 = vld [vmem:[%s606 + $0x4c] sm:$0xf]
  %v627 = vld [vmem:[%s606 + $0x50] sm:$0xf]
  %v628 = vld [vmem:[%s606 + $0x54] sm:$0xf]
  %v629 = vld [vmem:[%s606 + $0x58] sm:$0xf]
  %v630 = vld [vmem:[%s606 + $0x5c] sm:$0xf]
  %v631 = vld [vmem:[%s606 + $0x60] sm:$0xf]
  %v632 = vld [vmem:[%s606 + $0x64] sm:$0xf]
  %v633 = vld [vmem:[%s606 + $0x68] sm:$0xf]
  %v634 = vld [vmem:[%s606 + $0x6c] sm:$0xf]
  %v635 = vld [vmem:[%s606 + $0x70] sm:$0xf]
  %v636 = vld [vmem:[%s606 + $0x74] sm:$0xf]
  %v637 = vld [vmem:[%s606 + $0x78] sm:$0xf]
  %v638 = vld [vmem:[%s606 + $0x7c] sm:$0xf]
  %v639 = vld [vmem:[%s606 + $0x80] sm:$0xf]
  %v640 = vld [vmem:[%s606 + $0x84] sm:$0xf]
  %v641 = vld [vmem:[%s606 + $0x88] sm:$0xf]
  %v642 = vld [vmem:[%s606 + $0x8c] sm:$0xf]
  %v643 = vld [vmem:[%s606 + $0x90] sm:$0xf]
  %v644 = vld [vmem:[%s606 + $0x94] sm:$0xf]
  %v645 = vld [vmem:[%s606 + $0x98] sm:$0xf]
  %v646 = vld [vmem:[%s606 + $0x9c] sm:$0xf]
  %v647 = vld [vmem:[%s606 + $0xa0] sm:$0xf]
  %v648 = vld [vmem:[%s606 + $0xa4] sm:$0xf]
  %v649 = vld [vmem:[%s606 + $0xa8] sm:$0xf]
  %v650 = vld [vmem:[%s606 + $0xac] sm:$0xf]
  %v651 = vld [vmem:[%s606 + $0xb0] sm:$0xf]
  %v652 = vld [vmem:[%s606 + $0xb4] sm:$0xf]
  %v653 = vld [vmem:[%s606 + $0xb8] sm:$0xf]
  %v654 = vld [vmem:[%s606 + $0xbc] sm:$0xf]
  %v703 = vunpack.c.l.b16 %v607
  %v704 = vunpack.c.l.b16 %v608
  %v705 = vunpack.c.l.b16 %v609
  %v706 = vunpack.c.l.b16 %v610
  %v707 = vunpack.c.l.b16 %v611
  %v708 = vunpack.c.l.b16 %v612
  %v709 = vunpack.c.l.b16 %v613
  %v710 = vunpack.c.l.b16 %v614
  %v711 = vunpack.c.l.b16 %v615
  %v712 = vunpack.c.l.b16 %v616
  %v713 = vunpack.c.l.b16 %v617
  %v714 = vunpack.c.l.b16 %v618
  %v715 = vunpack.c.l.b16 %v619
  %v716 = vunpack.c.l.b16 %v620
  %v717 = vunpack.c.l.b16 %v621
  %v718 = vunpack.c.l.b16 %v622
  %v719 = vunpack.c.l.b16 %v623
  %v720 = vunpack.c.l.b16 %v624
  %v721 = vunpack.c.l.b16 %v625
  %v722 = vunpack.c.l.b16 %v626
  %v723 = vunpack.c.l.b16 %v627
  %v724 = vunpack.c.l.b16 %v628
  %v725 = vunpack.c.l.b16 %v629
  %v726 = vunpack.c.l.b16 %v630
  %v727 = vunpack.c.l.b16 %v631
  %v728 = vunpack.c.l.b16 %v632
  %v729 = vunpack.c.l.b16 %v633
  %v730 = vunpack.c.l.b16 %v634
  %v731 = vunpack.c.l.b16 %v635
  %v732 = vunpack.c.l.b16 %v636
  %v733 = vunpack.c.l.b16 %v637
  %v734 = vunpack.c.l.b16 %v638
  %v735 = vunpack.c.l.b16 %v639
  %v736 = vunpack.c.l.b16 %v640
  %v737 = vunpack.c.l.b16 %v641
  %v738 = vunpack.c.l.b16 %v642
  %v739 = vunpack.c.l.b16 %v643
  %v740 = vunpack.c.l.b16 %v644
  %v741 = vunpack.c.l.b16 %v645
  %v742 = vunpack.c.l.b16 %v646
  %v743 = vunpack.c.l.b16 %v647
  %v744 = vunpack.c.l.b16 %v648
  %v745 = vunpack.c.l.b16 %v649
  %v746 = vunpack.c.l.b16 %v650
  %v747 = vunpack.c.l.b16 %v651
  %v748 = vunpack.c.l.b16 %v652
  %v749 = vunpack.c.l.b16 %v653
  %v750 = vunpack.c.l.b16 %v654
  %v751 = vpack.c.b16 %v704, %v703
  %v752 = vpack.c.b16 %v706, %v705
  %v753 = vpack.c.b16 %v708, %v707
  %v754 = vpack.c.b16 %v710, %v709
  %v755 = vpack.c.b16 %v712, %v711
  %v756 = vpack.c.b16 %v714, %v713
  %v757 = vpack.c.b16 %v716, %v715
  %v758 = vpack.c.b16 %v718, %v717
  %v759 = vpack.c.b16 %v720, %v719
  %v760 = vpack.c.b16 %v722, %v721
  %v761 = vpack.c.b16 %v724, %v723
  %v762 = vpack.c.b16 %v726, %v725
  %v763 = vpack.c.b16 %v728, %v727
  %v764 = vpack.c.b16 %v730, %v729
  %v765 = vpack.c.b16 %v732, %v731
  %v766 = vpack.c.b16 %v734, %v733
  %v767 = vpack.c.b16 %v736, %v735
  %v768 = vpack.c.b16 %v738, %v737
  %v769 = vpack.c.b16 %v740, %v739
  %v770 = vpack.c.b16 %v742, %v741
  %v771 = vpack.c.b16 %v744, %v743
  %v772 = vpack.c.b16 %v746, %v745
  %v773 = vpack.c.b16 %v748, %v747
  %v774 = vpack.c.b16 %v750, %v749
  %799 = vmatprep.subr.bf16.mxu0 0
  %800 = vmatpush1.bf16.msra.mxu0 %v751
  %801 = vmatprep.subr.bf16.mxu0 0
  %802 = vmatpush1.bf16.msra.mxu0 %v752
  %803 = vmatprep.subr.bf16.mxu0 0
  %804 = vmatpush1.bf16.msra.mxu0 %v753
  %805 = vmatprep.subr.bf16.mxu0 0
  %806 = vmatpush1.bf16.msra.mxu0 %v754
  %807 = vmatprep.subr.bf16.mxu0 0
  %808 = vmatpush1.bf16.msra.mxu0 %v755
  %809 = vmatprep.subr.bf16.mxu0 0
  %810 = vmatpush1.bf16.msra.mxu0 %v756
  %811 = vmatprep.subr.bf16.mxu0 0
  %812 = vmatpush1.bf16.msra.mxu0 %v757
  %813 = vmatprep.subr.bf16.mxu0 0
  %814 = vmatpush1.bf16.msra.mxu0 %v758
  %815 = vmatprep.subr.bf16.mxu0 0
  %816 = vmatpush1.bf16.msra.mxu0 %v759
  %817 = vmatprep.subr.bf16.mxu0 0
  %818 = vmatpush1.bf16.msra.mxu0 %v760
  %819 = vmatprep.subr.bf16.mxu0 0
  %820 = vmatpush1.bf16.msra.mxu0 %v761
  %821 = vmatprep.subr.bf16.mxu0 0
  %822 = vmatpush1.bf16.msra.mxu0 %v762
  %823 = vmatprep.subr.bf16.mxu0 0
  %824 = vmatpush1.bf16.msra.mxu0 %v763
  %825 = vmatprep.subr.bf16.mxu0 0
  %826 = vmatpush1.bf16.msra.mxu0 %v764
  %827 = vmatprep.subr.bf16.mxu0 0
  %828 = vmatpush1.bf16.msra.mxu0 %v765
  %829 = vmatprep.subr.bf16.mxu0 0
  %830 = vmatpush1.bf16.msra.mxu0 %v766
  %831 = vmatprep.mubr.bf16.mxu0 %v601
  %832 = vmatmul.mubr.bf16.gmra.mrb[0].mxu0 %v600
  %v833 = vpop.f32.mrb[0].mxu0
  %v834 = vadd.f32 0.0, %v833
  %v835 = vpop.f32.mrb[0].mxu0
  %v836 = vpop.f32.mrb[0].mxu0
  %v837 = vadd.f32 0.0, %v836
  %v838 = vpop.f32.mrb[0].mxu0
  %839 = vmatprep.mubr.bf16.mxu0 %v604
  %840 = vmatmul.mubr.bf16.gmra.mrb[0].mxu0 %v603
  %v841 = vpop.f32.mrb[0].mxu0
  %v842 = vadd.f32 0.0, %v841
  %v843 = vpop.f32.mrb[0].mxu0
  %v844 = vpop.f32.mrb[0].mxu0
  %v845 = vadd.f32 0.0, %v844
  %v846 = vpop.f32.mrb[0].mxu0
  %847 = vdwg.mxu0
  %848 = vmatprep.subr.bf16.mxu0 0
  %849 = vmatpush1.bf16.msra.mxu0 %v767
  %850 = vmatprep.subr.bf16.mxu0 0
  %851 = vmatpush1.bf16.msra.mxu0 %v768
  %852 = vmatprep.subr.bf16.mxu0 0
  %853 = vmatpush1.bf16.msra.mxu0 %v769
  %854 = vmatprep.subr.bf16.mxu0 0
  %855 = vmatpush1.bf16.msra.mxu0 %v770
  %856 = vmatprep.subr.bf16.mxu0 0
  %857 = vmatpush1.bf16.msra.mxu0 %v771
  %858 = vmatprep.subr.bf16.mxu0 0
  %859 = vmatpush1.bf16.msra.mxu0 %v772
  %860 = vmatprep.subr.bf16.mxu0 0
  %861 = vmatpush1.bf16.msra.mxu0 %v773
  %862 = vmatprep.subr.bf16.mxu0 0
  %863 = vmatpush1.bf16.msra.mxu0 %v774
  %864 = vmatprep.subr.bf16.mxu0 0
  %865 = vmatpush1.bf16.msra.mxu0 0
  %866 = vmatprep.subr.bf16.mxu0 0
  %867 = vmatpush1.bf16.msra.mxu0 0
  %868 = vmatprep.subr.bf16.mxu0 0
  %869 = vmatpush1.bf16.msra.mxu0 0
  %870 = vmatprep.subr.bf16.mxu0 0
  %871 = vmatpush1.bf16.msra.mxu0 0
  %872 = vmatprep.subr.bf16.mxu0 0
  %873 = vmatpush1.bf16.msra.mxu0 0
  %874 = vmatprep.subr.bf16.mxu0 0
  %875 = vmatpush1.bf16.msra.mxu0 0
  %876 = vmatprep.subr.bf16.mxu0 0
  %877 = vmatpush1.bf16.msra.mxu0 0
  %878 = vmatprep.subr.bf16.mxu0 0
  %879 = vmatpush1.bf16.msra.mxu0 0
  %880 = vmatprep.mubr.bf16.mxu0 0
  %881 = vmatmul.mubr.bf16.gmra.mrb[0].mxu0 %v602
  %v882 = vpop.f32.mrb[0].mxu0
  %v883 = vadd.f32 %v834, %v882
  %v884 = vpop.f32.mrb[0].mxu0
  %v885 = vpop.f32.mrb[0].mxu0
  %v886 = vadd.f32 %v837, %v885
  %v887 = vpop.f32.mrb[0].mxu0
  %888 = vmatprep.mubr.bf16.mxu0 0
  %889 = vmatmul.mubr.bf16.gmra.mrb[0].mxu0 %v605
  %v890 = vpop.f32.mrb[0].mxu0
  %v891 = vadd.f32 %v842, %v890
  %v892 = vpop.f32.mrb[0].mxu0
  %v893 = vpop.f32.mrb[0].mxu0
  %v894 = vadd.f32 %v845, %v893
  %v895 = vpop.f32.mrb[0].mxu0
  %896 = vdwg.mxu0
  %v897 = vadd.f32 %v883, %v886
  %v898 = vrot.slane %v897, 4
  %v899 = vadd.f32 %v897, %v898
  %v900 = vrot.slane %v899, 2
  %v901 = vadd.f32 %v899, %v900
  %v902 = vrot.slane %v901, 1
  %v903 = vadd.f32 %v901, %v902
  %v904 = vadd.f32 %v891, %v894
  %v905 = vrot.slane %v904, 4
  %v906 = vadd.f32 %v904, %v905
  %v907 = vrot.slane %v906, 2
  %v908 = vadd.f32 %v906, %v907
  %v909 = vrot.slane %v908, 1
  %v910 = vadd.f32 %v908, %v909
  %v911 = vmul.f32 %v883, %v883
  %v912 = vmul.f32 %v886, %v886
  %v913 = vmul.f32 %v891, %v891
  %v914 = vmul.f32 %v894, %v894
  %v915 = vadd.f32 %v911, %v912
  %v916 = vrot.slane %v915, 4
  %v917 = vadd.f32 %v915, %v916
  %v918 = vrot.slane %v917, 2
  %v919 = vadd.f32 %v917, %v918
  %v920 = vrot.slane %v919, 1
  %v921 = vadd.f32 %v919, %v920
  %v922 = vadd.f32 %v913, %v914
  %v923 = vrot.slane %v922, 4
  %v924 = vadd.f32 %v922, %v923
  %v925 = vrot.slane %v924, 2
  %v926 = vadd.f32 %v924, %v925
  %v927 = vrot.slane %v926, 1
  %v928 = vadd.f32 %v926, %v927
  %v931 = vsel %vm433, %v910, %v903
  %933 = vrot.lane.b32.xlu0 %v931, 8
  %v934 = vpop.permute.xlu0 %933
  %v936 = vrot.slane %v934, 1
  %v939 = vadd.f32 %v903, %v934
  %v940 = vadd.f32 %v910, %v936
  %v943 = vsel %vm433, %v928, %v921
  %945 = vrot.lane.b32.xlu0 %v943, 8
  %v946 = vpop.permute.xlu0 %945
  %v948 = vrot.slane %v946, 1
  %v951 = vadd.f32 %v921, %v946
  %v952 = vadd.f32 %v928, %v948
  %v955 = vrot.slane %v940, 7
  %v956 = vsel %vm433, %v955, %v939
  %958 = vrot.lane.b32.xlu0 %v956, 16
  %v959 = vpop.permute.xlu0 %958
  %v961 = vrot.slane %v959, 1
  %v964 = vadd.f32 %v939, %v959
  %v965 = vadd.f32 %v940, %v961
  %v968 = vrot.slane %v952, 7
  %v969 = vsel %vm433, %v968, %v951
  %971 = vrot.lane.b32.xlu0 %v969, 16
  %v972 = vpop.permute.xlu0 %971
  %v974 = vrot.slane %v972, 1
  %v977 = vadd.f32 %v951, %v972
  %v978 = vadd.f32 %v952, %v974
  %v981 = vrot.slane %v965, 7
  %v982 = vsel %vm433, %v981, %v964
  %984 = vrot.lane.b32.xlu0 %v982, 32
  %v985 = vpop.permute.xlu0 %984
  %v987 = vrot.slane %v985, 1
  %v990 = vadd.f32 %v964, %v985
  %v991 = vadd.f32 %v965, %v987
  %v994 = vrot.slane %v978, 7
  %v995 = vsel %vm433, %v994, %v977
  %997 = vrot.lane.b32.xlu0 %v995, 32
  %v998 = vpop.permute.xlu0 %997
  %v1000 = vrot.slane %v998, 1
  %v1003 = vadd.f32 %v977, %v998
  %v1004 = vadd.f32 %v978, %v1000
  %v1007 = vrot.slane %v991, 7
  %v1008 = vsel %vm433, %v1007, %v990
  %1010 = vrot.lane.b32.xlu0 %v1008, 64
  %v1011 = vpop.permute.xlu0 %1010
  %v1013 = vrot.slane %v1011, 1
  %v1016 = vadd.f32 %v990, %v1011
  %v1017 = vadd.f32 %v991, %v1013
  %v1020 = vrot.slane %v1004, 7
  %v1021 = vsel %vm433, %v1020, %v1003
  %1023 = vrot.lane.b32.xlu0 %v1021, 64
  %v1024 = vpop.permute.xlu0 %1023
  %v1026 = vrot.slane %v1024, 1
  %v1029 = vadd.f32 %v1003, %v1024
  %v1030 = vadd.f32 %v1004, %v1026
  %v1031 = vmul.f32 %v1016, 0.00390625
  %v1032 = vmul.f32 %v1017, 0.00390625
  %v1033 = vmul.f32 %v1029, 0.00390625
  %v1034 = vmul.f32 %v1030, 0.00390625
  %v1035 = vmul.f32 %v1031, %v1031
  %v1036 = vmul.f32 %v1032, %v1032
  %v1037 = vsub.f32 %v1033, %v1035
  %v1038 = vsub.f32 %v1034, %v1036
  %v1039 = vmax.f32 %v1037, 0.0
  %v1040 = vmax.f32 %v1038, 0.0
  %v1041 = vlaneseq
  %v1042 = vshrl.u32 %v1041, 7
  %v1043 = vsub.s32 0, %v1042
  %v1044 = vrot.slane %v1031, %v1043
  %v1045 = vlaneseq
  %v1046 = vshrl.u32 %v1045, 7
  %v1047 = vsub.s32 0, %v1046
  %v1048 = vrot.slane %v1032, %v1047
  %v1049 = vsub.f32 %v883, %v1044
  %v1050 = vsub.f32 %v886, %v1044
  %v1051 = vsub.f32 %v891, %v1048
  %v1052 = vsub.f32 %v894, %v1048
  %v1053 = vadd.f32 %v1039, 1e-05
  %v1054 = vadd.f32 %v1040, 1e-05
  %v1055 = vrsqrt.pop %v1053
  %v1056 = vrsqrt.pop %v1054
  %v1057 = vlaneseq
  %v1058 = vshrl.u32 %v1057, 7
  %v1059 = vsub.s32 0, %v1058
  %v1060 = vrot.slane %v1055, %v1059
  %v1061 = vlaneseq
  %v1062 = vshrl.u32 %v1061, 7
  %v1063 = vsub.s32 0, %v1062
  %v1064 = vrot.slane %v1056, %v1063
  %v1065 = vmul.f32 %v1049, %v1060
  %v1066 = vmul.f32 %v1050, %v1060
  %v1067 = vmul.f32 %v1051, %v1064
  %v1068 = vmul.f32 %v1052, %v1064
  %v1069 = vmul.f32 %v1065, 0.1
  %v1070 = vmul.f32 %v1066, 0.1
  %v1071 = vmul.f32 %v1067, 0.1
  %v1072 = vmul.f32 %v1068, 0.1
  %v1073 = vadd.f32 %v73, %v1069
  %v1074 = vadd.f32 %v74, %v1070
  %v1075 = vadd.f32 %v75, %v1071
  %v1076 = vadd.f32 %v76, %v1072
  %v1077 = vrot.slane %v1073, 7
  %v1078 = vrot.slane %v1074, 7
  %v1079 = vrot.slane %v1075, 7
  %v1080 = vrot.slane %v1076, 7
  %v1081 = vsel %vm81, %v1079, %v1080
  %v1082 = vsel %vm81, %v1078, %v1079
  %v1083 = vsel %vm81, %v1077, %v1078
  %v1084 = vsel %vm81, %v1080, %v1077
  %v1085 = vsel %vm65, 0.0, %v1084
  %v1086 = vsel %vm66, 0.0, %v1083
  %v1087 = vsel %vm67, 0.0, %v1082
  %v1088 = vsel %vm68, 0.0, %v1081
  %v1089 = vrot.slane %v1073, 1
  %v1090 = vrot.slane %v1074, 1
  %v1091 = vrot.slane %v1075, 1
  %v1092 = vrot.slane %v1076, 1
  %v1093 = vsel %vm94, %v1091, %v1092
  %v1094 = vsel %vm94, %v1090, %v1091
  %v1095 = vsel %vm94, %v1089, %v1090
  %v1096 = vsel %vm94, %v1092, %v1089
  %v1097 = vsel %vm69, 0.0, %v1095
  %v1098 = vsel %vm70, 0.0, %v1094
  %v1099 = vsel %vm71, 0.0, %v1093
  %v1100 = vsel %vm72, 0.0, %v1096
  %v1101 = vpack.c.bf16 %v1086, %v1085
  %v1102 = vpack.c.bf16 %v1074, %v1073
  %v1103 = vpack.c.bf16 %v1098, %v1097
  %v1104 = vpack.c.bf16 %v1088, %v1087
  %v1105 = vpack.c.bf16 %v1076, %v1075
  %v1106 = vpack.c.bf16 %v1100, %v1099
  %s1107 = scalar_lea.vmem %s1, 384
  %v1108 = vld [vmem:[%s1107] sm:$0xf]
  %v1109 = vld [vmem:[%s1107 + $0x4] sm:$0xf]
  %v1110 = vld [vmem:[%s1107 + $0x8] sm:$0xf]
  %v1111 = vld [vmem:[%s1107 + $0xc] sm:$0xf]
  %v1112 = vld [vmem:[%s1107 + $0x10] sm:$0xf]
  %v1113 = vld [vmem:[%s1107 + $0x14] sm:$0xf]
  %v1114 = vld [vmem:[%s1107 + $0x18] sm:$0xf]
  %v1115 = vld [vmem:[%s1107 + $0x1c] sm:$0xf]
  %v1116 = vld [vmem:[%s1107 + $0x20] sm:$0xf]
  %v1117 = vld [vmem:[%s1107 + $0x24] sm:$0xf]
  %v1118 = vld [vmem:[%s1107 + $0x28] sm:$0xf]
  %v1119 = vld [vmem:[%s1107 + $0x2c] sm:$0xf]
  %v1120 = vld [vmem:[%s1107 + $0x30] sm:$0xf]
  %v1121 = vld [vmem:[%s1107 + $0x34] sm:$0xf]
  %v1122 = vld [vmem:[%s1107 + $0x38] sm:$0xf]
  %v1123 = vld [vmem:[%s1107 + $0x3c] sm:$0xf]
  %v1124 = vld [vmem:[%s1107 + $0x40] sm:$0xf]
  %v1125 = vld [vmem:[%s1107 + $0x44] sm:$0xf]
  %v1126 = vld [vmem:[%s1107 + $0x48] sm:$0xf]
  %v1127 = vld [vmem:[%s1107 + $0x4c] sm:$0xf]
  %v1128 = vld [vmem:[%s1107 + $0x50] sm:$0xf]
  %v1129 = vld [vmem:[%s1107 + $0x54] sm:$0xf]
  %v1130 = vld [vmem:[%s1107 + $0x58] sm:$0xf]
  %v1131 = vld [vmem:[%s1107 + $0x5c] sm:$0xf]
  %v1132 = vld [vmem:[%s1107 + $0x60] sm:$0xf]
  %v1133 = vld [vmem:[%s1107 + $0x64] sm:$0xf]
  %v1134 = vld [vmem:[%s1107 + $0x68] sm:$0xf]
  %v1135 = vld [vmem:[%s1107 + $0x6c] sm:$0xf]
  %v1136 = vld [vmem:[%s1107 + $0x70] sm:$0xf]
  %v1137 = vld [vmem:[%s1107 + $0x74] sm:$0xf]
  %v1138 = vld [vmem:[%s1107 + $0x78] sm:$0xf]
  %v1139 = vld [vmem:[%s1107 + $0x7c] sm:$0xf]
  %v1140 = vld [vmem:[%s1107 + $0x80] sm:$0xf]
  %v1141 = vld [vmem:[%s1107 + $0x84] sm:$0xf]
  %v1142 = vld [vmem:[%s1107 + $0x88] sm:$0xf]
  %v1143 = vld [vmem:[%s1107 + $0x8c] sm:$0xf]
  %v1144 = vld [vmem:[%s1107 + $0x90] sm:$0xf]
  %v1145 = vld [vmem:[%s1107 + $0x94] sm:$0xf]
  %v1146 = vld [vmem:[%s1107 + $0x98] sm:$0xf]
  %v1147 = vld [vmem:[%s1107 + $0x9c] sm:$0xf]
  %v1148 = vld [vmem:[%s1107 + $0xa0] sm:$0xf]
  %v1149 = vld [vmem:[%s1107 + $0xa4] sm:$0xf]
  %v1150 = vld [vmem:[%s1107 + $0xa8] sm:$0xf]
  %v1151 = vld [vmem:[%s1107 + $0xac] sm:$0xf]
  %v1152 = vld [vmem:[%s1107 + $0xb0] sm:$0xf]
  %v1153 = vld [vmem:[%s1107 + $0xb4] sm:$0xf]
  %v1154 = vld [vmem:[%s1107 + $0xb8] sm:$0xf]
  %v1155 = vld [vmem:[%s1107 + $0xbc] sm:$0xf]
  %v1204 = vunpack.c.l.b16 %v1108
  %v1205 = vunpack.c.l.b16 %v1109
  %v1206 = vunpack.c.l.b16 %v1110
  %v1207 = vunpack.c.l.b16 %v1111
  %v1208 = vunpack.c.l.b16 %v1112
  %v1209 = vunpack.c.l.b16 %v1113
  %v1210 = vunpack.c.l.b16 %v1114
  %v1211 = vunpack.c.l.b16 %v1115
  %v1212 = vunpack.c.l.b16 %v1116
  %v1213 = vunpack.c.l.b16 %v1117
  %v1214 = vunpack.c.l.b16 %v1118
  %v1215 = vunpack.c.l.b16 %v1119
  %v1216 = vunpack.c.l.b16 %v1120
  %v1217 = vunpack.c.l.b16 %v1121
  %v1218 = vunpack.c.l.b16 %v1122
  %v1219 = vunpack.c.l.b16 %v1123
  %v1220 = vunpack.c.l.b16 %v1124
  %v1221 = vunpack.c.l.b16 %v1125
  %v1222 = vunpack.c.l.b16 %v1126
  %v1223 = vunpack.c.l.b16 %v1127
  %v1224 = vunpack.c.l.b16 %v1128
  %v1225 = vunpack.c.l.b16 %v1129
  %v1226 = vunpack.c.l.b16 %v1130
  %v1227 = vunpack.c.l.b16 %v1131
  %v1228 = vunpack.c.l.b16 %v1132
  %v1229 = vunpack.c.l.b16 %v1133
  %v1230 = vunpack.c.l.b16 %v1134
  %v1231 = vunpack.c.l.b16 %v1135
  %v1232 = vunpack.c.l.b16 %v1136
  %v1233 = vunpack.c.l.b16 %v1137
  %v1234 = vunpack.c.l.b16 %v1138
  %v1235 = vunpack.c.l.b16 %v1139
  %v1236 = vunpack.c.l.b16 %v1140
  %v1237 = vunpack.c.l.b16 %v1141
  %v1238 = vunpack.c.l.b16 %v1142
  %v1239 = vunpack.c.l.b16 %v1143
  %v1240 = vunpack.c.l.b16 %v1144
  %v1241 = vunpack.c.l.b16 %v1145
  %v1242 = vunpack.c.l.b16 %v1146
  %v1243 = vunpack.c.l.b16 %v1147
  %v1244 = vunpack.c.l.b16 %v1148
  %v1245 = vunpack.c.l.b16 %v1149
  %v1246 = vunpack.c.l.b16 %v1150
  %v1247 = vunpack.c.l.b16 %v1151
  %v1248 = vunpack.c.l.b16 %v1152
  %v1249 = vunpack.c.l.b16 %v1153
  %v1250 = vunpack.c.l.b16 %v1154
  %v1251 = vunpack.c.l.b16 %v1155
  %v1252 = vpack.c.b16 %v1205, %v1204
  %v1253 = vpack.c.b16 %v1207, %v1206
  %v1254 = vpack.c.b16 %v1209, %v1208
  %v1255 = vpack.c.b16 %v1211, %v1210
  %v1256 = vpack.c.b16 %v1213, %v1212
  %v1257 = vpack.c.b16 %v1215, %v1214
  %v1258 = vpack.c.b16 %v1217, %v1216
  %v1259 = vpack.c.b16 %v1219, %v1218
  %v1260 = vpack.c.b16 %v1221, %v1220
  %v1261 = vpack.c.b16 %v1223, %v1222
  %v1262 = vpack.c.b16 %v1225, %v1224
  %v1263 = vpack.c.b16 %v1227, %v1226
  %v1264 = vpack.c.b16 %v1229, %v1228
  %v1265 = vpack.c.b16 %v1231, %v1230
  %v1266 = vpack.c.b16 %v1233, %v1232
  %v1267 = vpack.c.b16 %v1235, %v1234
  %v1268 = vpack.c.b16 %v1237, %v1236
  %v1269 = vpack.c.b16 %v1239, %v1238
  %v1270 = vpack.c.b16 %v1241, %v1240
  %v1271 = vpack.c.b16 %v1243, %v1242
  %v1272 = vpack.c.b16 %v1245, %v1244
  %v1273 = vpack.c.b16 %v1247, %v1246
  %v1274 = vpack.c.b16 %v1249, %v1248
  %v1275 = vpack.c.b16 %v1251, %v1250
  %1300 = vmatprep.subr.bf16.mxu0 0
  %1301 = vmatpush1.bf16.msra.mxu0 %v1252
  %1302 = vmatprep.subr.bf16.mxu0 0
  %1303 = vmatpush1.bf16.msra.mxu0 %v1253
  %1304 = vmatprep.subr.bf16.mxu0 0
  %1305 = vmatpush1.bf16.msra.mxu0 %v1254
  %1306 = vmatprep.subr.bf16.mxu0 0
  %1307 = vmatpush1.bf16.msra.mxu0 %v1255
  %1308 = vmatprep.subr.bf16.mxu0 0
  %1309 = vmatpush1.bf16.msra.mxu0 %v1256
  %1310 = vmatprep.subr.bf16.mxu0 0
  %1311 = vmatpush1.bf16.msra.mxu0 %v1257
  %1312 = vmatprep.subr.bf16.mxu0 0
  %1313 = vmatpush1.bf16.msra.mxu0 %v1258
  %1314 = vmatprep.subr.bf16.mxu0 0
  %1315 = vmatpush1.bf16.msra.mxu0 %v1259
  %1316 = vmatprep.subr.bf16.mxu0 0
  %1317 = vmatpush1.bf16.msra.mxu0 %v1260
  %1318 = vmatprep.subr.bf16.mxu0 0
  %1319 = vmatpush1.bf16.msra.mxu0 %v1261
  %1320 = vmatprep.subr.bf16.mxu0 0
  %1321 = vmatpush1.bf16.msra.mxu0 %v1262
  %1322 = vmatprep.subr.bf16.mxu0 0
  %1323 = vmatpush1.bf16.msra.mxu0 %v1263
  %1324 = vmatprep.subr.bf16.mxu0 0
  %1325 = vmatpush1.bf16.msra.mxu0 %v1264
  %1326 = vmatprep.subr.bf16.mxu0 0
  %1327 = vmatpush1.bf16.msra.mxu0 %v1265
  %1328 = vmatprep.subr.bf16.mxu0 0
  %1329 = vmatpush1.bf16.msra.mxu0 %v1266
  %1330 = vmatprep.subr.bf16.mxu0 0
  %1331 = vmatpush1.bf16.msra.mxu0 %v1267
  %1332 = vmatprep.mubr.bf16.mxu0 %v1102
  %1333 = vmatmul.mubr.bf16.gmra.mrb[0].mxu0 %v1101
  %v1334 = vpop.f32.mrb[0].mxu0
  %v1335 = vadd.f32 0.0, %v1334
  %v1336 = vpop.f32.mrb[0].mxu0
  %v1337 = vpop.f32.mrb[0].mxu0
  %v1338 = vadd.f32 0.0, %v1337
  %v1339 = vpop.f32.mrb[0].mxu0
  %1340 = vmatprep.mubr.bf16.mxu0 %v1105
  %1341 = vmatmul.mubr.bf16.gmra.mrb[0].mxu0 %v1104
  %v1342 = vpop.f32.mrb[0].mxu0
  %v1343 = vadd.f32 0.0, %v1342
  %v1344 = vpop.f32.mrb[0].mxu0
  %v1345 = vpop.f32.mrb[0].mxu0
  %v1346 = vadd.f32 0.0, %v1345
  %v1347 = vpop.f32.mrb[0].mxu0
  %1348 = vdwg.mxu0
  %1349 = vmatprep.subr.bf16.mxu0 0
  %1350 = vmatpush1.bf16.msra.mxu0 %v1268
  %1351 = vmatprep.subr.bf16.mxu0 0
  %1352 = vmatpush1.bf16.msra.mxu0 %v1269
  %1353 = vmatprep.subr.bf16.mxu0 0
  %1354 = vmatpush1.bf16.msra.mxu0 %v1270
  %1355 = vmatprep.subr.bf16.mxu0 0
  %1356 = vmatpush1.bf16.msra.mxu0 %v1271
  %1357 = vmatprep.subr.bf16.mxu0 0
  %1358 = vmatpush1.bf16.msra.mxu0 %v1272
  %1359 = vmatprep.subr.bf16.mxu0 0
  %1360 = vmatpush1.bf16.msra.mxu0 %v1273
  %1361 = vmatprep.subr.bf16.mxu0 0
  %1362 = vmatpush1.bf16.msra.mxu0 %v1274
  %1363 = vmatprep.subr.bf16.mxu0 0
  %1364 = vmatpush1.bf16.msra.mxu0 %v1275
  %1365 = vmatprep.subr.bf16.mxu0 0
  %1366 = vmatpush1.bf16.msra.mxu0 0
  %1367 = vmatprep.subr.bf16.mxu0 0
  %1368 = vmatpush1.bf16.msra.mxu0 0
  %1369 = vmatprep.subr.bf16.mxu0 0
  %1370 = vmatpush1.bf16.msra.mxu0 0
  %1371 = vmatprep.subr.bf16.mxu0 0
  %1372 = vmatpush1.bf16.msra.mxu0 0
  %1373 = vmatprep.subr.bf16.mxu0 0
  %1374 = vmatpush1.bf16.msra.mxu0 0
  %1375 = vmatprep.subr.bf16.mxu0 0
  %1376 = vmatpush1.bf16.msra.mxu0 0
  %1377 = vmatprep.subr.bf16.mxu0 0
  %1378 = vmatpush1.bf16.msra.mxu0 0
  %1379 = vmatprep.subr.bf16.mxu0 0
  %1380 = vmatpush1.bf16.msra.mxu0 0
  %1381 = vmatprep.mubr.bf16.mxu0 0
  %1382 = vmatmul.mubr.bf16.gmra.mrb[0].mxu0 %v1103
  %v1383 = vpop.f32.mrb[0].mxu0
  %v1384 = vadd.f32 %v1335, %v1383
  %v1385 = vpop.f32.mrb[0].mxu0
  %v1386 = vpop.f32.mrb[0].mxu0
  %v1387 = vadd.f32 %v1338, %v1386
  %v1388 = vpop.f32.mrb[0].mxu0
  %1389 = vmatprep.mubr.bf16.mxu0 0
  %1390 = vmatmul.mubr.bf16.gmra.mrb[0].mxu0 %v1106
  %v1391 = vpop.f32.mrb[0].mxu0
  %v1392 = vadd.f32 %v1343, %v1391
  %v1393 = vpop.f32.mrb[0].mxu0
  %v1394 = vpop.f32.mrb[0].mxu0
  %v1395 = vadd.f32 %v1346, %v1394
  %v1396 = vpop.f32.mrb[0].mxu0
  %1397 = vdwg.mxu0
  %v1398 = vadd.f32 %v1384, %v1387
  %v1399 = vrot.slane %v1398, 4
  %v1400 = vadd.f32 %v1398, %v1399
  %v1401 = vrot.slane %v1400, 2
  %v1402 = vadd.f32 %v1400, %v1401
  %v1403 = vrot.slane %v1402, 1
  %v1404 = vadd.f32 %v1402, %v1403
  %v1405 = vadd.f32 %v1392, %v1395
  %v1406 = vrot.slane %v1405, 4
  %v1407 = vadd.f32 %v1405, %v1406
  %v1408 = vrot.slane %v1407, 2
  %v1409 = vadd.f32 %v1407, %v1408
  %v1410 = vrot.slane %v1409, 1
  %v1411 = vadd.f32 %v1409, %v1410
  %v1412 = vmul.f32 %v1384, %v1384
  %v1413 = vmul.f32 %v1387, %v1387
  %v1414 = vmul.f32 %v1392, %v1392
  %v1415 = vmul.f32 %v1395, %v1395
  %v1416 = vadd.f32 %v1412, %v1413
  %v1417 = vrot.slane %v1416, 4
  %v1418 = vadd.f32 %v1416, %v1417
  %v1419 = vrot.slane %v1418, 2
  %v1420 = vadd.f32 %v1418, %v1419
  %v1421 = vrot.slane %v1420, 1
  %v1422 = vadd.f32 %v1420, %v1421
  %v1423 = vadd.f32 %v1414, %v1415
  %v1424 = vrot.slane %v1423, 4
  %v1425 = vadd.f32 %v1423, %v1424
  %v1426 = vrot.slane %v1425, 2
  %v1427 = vadd.f32 %v1425, %v1426
  %v1428 = vrot.slane %v1427, 1
  %v1429 = vadd.f32 %v1427, %v1428
  %v1432 = vsel %vm433, %v1411, %v1404
  %1434 = vrot.lane.b32.xlu0 %v1432, 8
  %v1435 = vpop.permute.xlu0 %1434
  %v1437 = vrot.slane %v1435, 1
  %v1440 = vadd.f32 %v1404, %v1435
  %v1441 = vadd.f32 %v1411, %v1437
  %v1444 = vsel %vm433, %v1429, %v1422
  %1446 = vrot.lane.b32.xlu0 %v1444, 8
  %v1447 = vpop.permute.xlu0 %1446
  %v1449 = vrot.slane %v1447, 1
  %v1452 = vadd.f32 %v1422, %v1447
  %v1453 = vadd.f32 %v1429, %v1449
  %v1456 = vrot.slane %v1441, 7
  %v1457 = vsel %vm433, %v1456, %v1440
  %1459 = vrot.lane.b32.xlu0 %v1457, 16
  %v1460 = vpop.permute.xlu0 %1459
  %v1462 = vrot.slane %v1460, 1
  %v1465 = vadd.f32 %v1440, %v1460
  %v1466 = vadd.f32 %v1441, %v1462
  %v1469 = vrot.slane %v1453, 7
  %v1470 = vsel %vm433, %v1469, %v1452
  %1472 = vrot.lane.b32.xlu0 %v1470, 16
  %v1473 = vpop.permute.xlu0 %1472
  %v1475 = vrot.slane %v1473, 1
  %v1478 = vadd.f32 %v1452, %v1473
  %v1479 = vadd.f32 %v1453, %v1475
  %v1482 = vrot.slane %v1466, 7
  %v1483 = vsel %vm433, %v1482, %v1465
  %1485 = vrot.lane.b32.xlu0 %v1483, 32
  %v1486 = vpop.permute.xlu0 %1485
  %v1488 = vrot.slane %v1486, 1
  %v1491 = vadd.f32 %v1465, %v1486
  %v1492 = vadd.f32 %v1466, %v1488
  %v1495 = vrot.slane %v1479, 7
  %v1496 = vsel %vm433, %v1495, %v1478
  %1498 = vrot.lane.b32.xlu0 %v1496, 32
  %v1499 = vpop.permute.xlu0 %1498
  %v1501 = vrot.slane %v1499, 1
  %v1504 = vadd.f32 %v1478, %v1499
  %v1505 = vadd.f32 %v1479, %v1501
  %v1508 = vrot.slane %v1492, 7
  %v1509 = vsel %vm433, %v1508, %v1491
  %1511 = vrot.lane.b32.xlu0 %v1509, 64
  %v1512 = vpop.permute.xlu0 %1511
  %v1514 = vrot.slane %v1512, 1
  %v1517 = vadd.f32 %v1491, %v1512
  %v1518 = vadd.f32 %v1492, %v1514
  %v1521 = vrot.slane %v1505, 7
  %v1522 = vsel %vm433, %v1521, %v1504
  %1524 = vrot.lane.b32.xlu0 %v1522, 64
  %v1525 = vpop.permute.xlu0 %1524
  %v1527 = vrot.slane %v1525, 1
  %v1530 = vadd.f32 %v1504, %v1525
  %v1531 = vadd.f32 %v1505, %v1527
  %v1532 = vmul.f32 %v1517, 0.00390625
  %v1533 = vmul.f32 %v1518, 0.00390625
  %v1534 = vmul.f32 %v1530, 0.00390625
  %v1535 = vmul.f32 %v1531, 0.00390625
  %v1536 = vmul.f32 %v1532, %v1532
  %v1537 = vmul.f32 %v1533, %v1533
  %v1538 = vsub.f32 %v1534, %v1536
  %v1539 = vsub.f32 %v1535, %v1537
  %v1540 = vmax.f32 %v1538, 0.0
  %v1541 = vmax.f32 %v1539, 0.0
  %v1542 = vlaneseq
  %v1543 = vshrl.u32 %v1542, 7
  %v1544 = vsub.s32 0, %v1543
  %v1545 = vrot.slane %v1532, %v1544
  %v1546 = vlaneseq
  %v1547 = vshrl.u32 %v1546, 7
  %v1548 = vsub.s32 0, %v1547
  %v1549 = vrot.slane %v1533, %v1548
  %v1550 = vsub.f32 %v1384, %v1545
  %v1551 = vsub.f32 %v1387, %v1545
  %v1552 = vsub.f32 %v1392, %v1549
  %v1553 = vsub.f32 %v1395, %v1549
  %v1554 = vadd.f32 %v1540, 1e-05
  %v1555 = vadd.f32 %v1541, 1e-05
  %v1556 = vrsqrt.pop %v1554
  %v1557 = vrsqrt.pop %v1555
  %v1558 = vlaneseq
  %v1559 = vshrl.u32 %v1558, 7
  %v1560 = vsub.s32 0, %v1559
  %v1561 = vrot.slane %v1556, %v1560
  %v1562 = vlaneseq
  %v1563 = vshrl.u32 %v1562, 7
  %v1564 = vsub.s32 0, %v1563
  %v1565 = vrot.slane %v1557, %v1564
  %v1566 = vmul.f32 %v1550, %v1561
  %v1567 = vmul.f32 %v1551, %v1561
  %v1568 = vmul.f32 %v1552, %v1565
  %v1569 = vmul.f32 %v1553, %v1565
  %v1570 = vmax.f32 %v1566, 0.0
  %v1571 = vmax.f32 %v1567, 0.0
  %v1572 = vmax.f32 %v1568, 0.0
  %v1573 = vmax.f32 %v1569, 0.0
  %v1574 = vrot.slane %v1570, 7
  %v1575 = vrot.slane %v1571, 7
  %v1576 = vrot.slane %v1572, 7
  %v1577 = vrot.slane %v1573, 7
  %v1578 = vsel %vm81, %v1576, %v1577
  %v1579 = vsel %vm81, %v1575, %v1576
  %v1580 = vsel %vm81, %v1574, %v1575
  %v1581 = vsel %vm81, %v1577, %v1574
  %v1582 = vsel %vm65, 0.0, %v1581
  %v1583 = vsel %vm66, 0.0, %v1580
  %v1584 = vsel %vm67, 0.0, %v1579
  %v1585 = vsel %vm68, 0.0, %v1578
  %v1586 = vrot.slane %v1570, 1
  %v1587 = vrot.slane %v1571, 1
  %v1588 = vrot.slane %v1572, 1
  %v1589 = vrot.slane %v1573, 1
  %v1590 = vsel %vm94, %v1588, %v1589
  %v1591 = vsel %vm94, %v1587, %v1588
  %v1592 = vsel %vm94, %v1586, %v1587
  %v1593 = vsel %vm94, %v1589, %v1586
  %v1594 = vsel %vm69, 0.0, %v1592
  %v1595 = vsel %vm70, 0.0, %v1591
  %v1596 = vsel %vm71, 0.0, %v1590
  %v1597 = vsel %vm72, 0.0, %v1593
  %v1598 = vpack.c.bf16 %v1583, %v1582
  %v1599 = vpack.c.bf16 %v1571, %v1570
  %v1600 = vpack.c.bf16 %v1595, %v1594
  %v1601 = vpack.c.bf16 %v1585, %v1584
  %v1602 = vpack.c.bf16 %v1573, %v1572
  %v1603 = vpack.c.bf16 %v1597, %v1596
  %s1604 = scalar_lea.vmem %s1, 576
  %v1605 = vld [vmem:[%s1604] sm:$0xf]
  %v1606 = vld [vmem:[%s1604 + $0x4] sm:$0xf]
  %v1607 = vld [vmem:[%s1604 + $0x8] sm:$0xf]
  %v1608 = vld [vmem:[%s1604 + $0xc] sm:$0xf]
  %v1609 = vld [vmem:[%s1604 + $0x10] sm:$0xf]
  %v1610 = vld [vmem:[%s1604 + $0x14] sm:$0xf]
  %v1611 = vld [vmem:[%s1604 + $0x18] sm:$0xf]
  %v1612 = vld [vmem:[%s1604 + $0x1c] sm:$0xf]
  %v1613 = vld [vmem:[%s1604 + $0x20] sm:$0xf]
  %v1614 = vld [vmem:[%s1604 + $0x24] sm:$0xf]
  %v1615 = vld [vmem:[%s1604 + $0x28] sm:$0xf]
  %v1616 = vld [vmem:[%s1604 + $0x2c] sm:$0xf]
  %v1617 = vld [vmem:[%s1604 + $0x30] sm:$0xf]
  %v1618 = vld [vmem:[%s1604 + $0x34] sm:$0xf]
  %v1619 = vld [vmem:[%s1604 + $0x38] sm:$0xf]
  %v1620 = vld [vmem:[%s1604 + $0x3c] sm:$0xf]
  %v1621 = vld [vmem:[%s1604 + $0x40] sm:$0xf]
  %v1622 = vld [vmem:[%s1604 + $0x44] sm:$0xf]
  %v1623 = vld [vmem:[%s1604 + $0x48] sm:$0xf]
  %v1624 = vld [vmem:[%s1604 + $0x4c] sm:$0xf]
  %v1625 = vld [vmem:[%s1604 + $0x50] sm:$0xf]
  %v1626 = vld [vmem:[%s1604 + $0x54] sm:$0xf]
  %v1627 = vld [vmem:[%s1604 + $0x58] sm:$0xf]
  %v1628 = vld [vmem:[%s1604 + $0x5c] sm:$0xf]
  %v1629 = vld [vmem:[%s1604 + $0x60] sm:$0xf]
  %v1630 = vld [vmem:[%s1604 + $0x64] sm:$0xf]
  %v1631 = vld [vmem:[%s1604 + $0x68] sm:$0xf]
  %v1632 = vld [vmem:[%s1604 + $0x6c] sm:$0xf]
  %v1633 = vld [vmem:[%s1604 + $0x70] sm:$0xf]
  %v1634 = vld [vmem:[%s1604 + $0x74] sm:$0xf]
  %v1635 = vld [vmem:[%s1604 + $0x78] sm:$0xf]
  %v1636 = vld [vmem:[%s1604 + $0x7c] sm:$0xf]
  %v1637 = vld [vmem:[%s1604 + $0x80] sm:$0xf]
  %v1638 = vld [vmem:[%s1604 + $0x84] sm:$0xf]
  %v1639 = vld [vmem:[%s1604 + $0x88] sm:$0xf]
  %v1640 = vld [vmem:[%s1604 + $0x8c] sm:$0xf]
  %v1641 = vld [vmem:[%s1604 + $0x90] sm:$0xf]
  %v1642 = vld [vmem:[%s1604 + $0x94] sm:$0xf]
  %v1643 = vld [vmem:[%s1604 + $0x98] sm:$0xf]
  %v1644 = vld [vmem:[%s1604 + $0x9c] sm:$0xf]
  %v1645 = vld [vmem:[%s1604 + $0xa0] sm:$0xf]
  %v1646 = vld [vmem:[%s1604 + $0xa4] sm:$0xf]
  %v1647 = vld [vmem:[%s1604 + $0xa8] sm:$0xf]
  %v1648 = vld [vmem:[%s1604 + $0xac] sm:$0xf]
  %v1649 = vld [vmem:[%s1604 + $0xb0] sm:$0xf]
  %v1650 = vld [vmem:[%s1604 + $0xb4] sm:$0xf]
  %v1651 = vld [vmem:[%s1604 + $0xb8] sm:$0xf]
  %v1652 = vld [vmem:[%s1604 + $0xbc] sm:$0xf]
  %v1701 = vunpack.c.l.b16 %v1605
  %v1702 = vunpack.c.l.b16 %v1606
  %v1703 = vunpack.c.l.b16 %v1607
  %v1704 = vunpack.c.l.b16 %v1608
  %v1705 = vunpack.c.l.b16 %v1609
  %v1706 = vunpack.c.l.b16 %v1610
  %v1707 = vunpack.c.l.b16 %v1611
  %v1708 = vunpack.c.l.b16 %v1612
  %v1709 = vunpack.c.l.b16 %v1613
  %v1710 = vunpack.c.l.b16 %v1614
  %v1711 = vunpack.c.l.b16 %v1615
  %v1712 = vunpack.c.l.b16 %v1616
  %v1713 = vunpack.c.l.b16 %v1617
  %v1714 = vunpack.c.l.b16 %v1618
  %v1715 = vunpack.c.l.b16 %v1619
  %v1716 = vunpack.c.l.b16 %v1620
  %v1717 = vunpack.c.l.b16 %v1621
  %v1718 = vunpack.c.l.b16 %v1622
  %v1719 = vunpack.c.l.b16 %v1623
  %v1720 = vunpack.c.l.b16 %v1624
  %v1721 = vunpack.c.l.b16 %v1625
  %v1722 = vunpack.c.l.b16 %v1626
  %v1723 = vunpack.c.l.b16 %v1627
  %v1724 = vunpack.c.l.b16 %v1628
  %v1725 = vunpack.c.l.b16 %v1629
  %v1726 = vunpack.c.l.b16 %v1630
  %v1727 = vunpack.c.l.b16 %v1631
  %v1728 = vunpack.c.l.b16 %v1632
  %v1729 = vunpack.c.l.b16 %v1633
  %v1730 = vunpack.c.l.b16 %v1634
  %v1731 = vunpack.c.l.b16 %v1635
  %v1732 = vunpack.c.l.b16 %v1636
  %v1733 = vunpack.c.l.b16 %v1637
  %v1734 = vunpack.c.l.b16 %v1638
  %v1735 = vunpack.c.l.b16 %v1639
  %v1736 = vunpack.c.l.b16 %v1640
  %v1737 = vunpack.c.l.b16 %v1641
  %v1738 = vunpack.c.l.b16 %v1642
  %v1739 = vunpack.c.l.b16 %v1643
  %v1740 = vunpack.c.l.b16 %v1644
  %v1741 = vunpack.c.l.b16 %v1645
  %v1742 = vunpack.c.l.b16 %v1646
  %v1743 = vunpack.c.l.b16 %v1647
  %v1744 = vunpack.c.l.b16 %v1648
  %v1745 = vunpack.c.l.b16 %v1649
  %v1746 = vunpack.c.l.b16 %v1650
  %v1747 = vunpack.c.l.b16 %v1651
  %v1748 = vunpack.c.l.b16 %v1652
  %v1749 = vpack.c.b16 %v1702, %v1701
  %v1750 = vpack.c.b16 %v1704, %v1703
  %v1751 = vpack.c.b16 %v1706, %v1705
  %v1752 = vpack.c.b16 %v1708, %v1707
  %v1753 = vpack.c.b16 %v1710, %v1709
  %v1754 = vpack.c.b16 %v1712, %v1711
  %v1755 = vpack.c.b16 %v1714, %v1713
  %v1756 = vpack.c.b16 %v1716, %v1715
  %v1757 = vpack.c.b16 %v1718, %v1717
  %v1758 = vpack.c.b16 %v1720, %v1719
  %v1759 = vpack.c.b16 %v1722, %v1721
  %v1760 = vpack.c.b16 %v1724, %v1723
  %v1761 = vpack.c.b16 %v1726, %v1725
  %v1762 = vpack.c.b16 %v1728, %v1727
  %v1763 = vpack.c.b16 %v1730, %v1729
  %v1764 = vpack.c.b16 %v1732, %v1731
  %v1765 = vpack.c.b16 %v1734, %v1733
  %v1766 = vpack.c.b16 %v1736, %v1735
  %v1767 = vpack.c.b16 %v1738, %v1737
  %v1768 = vpack.c.b16 %v1740, %v1739
  %v1769 = vpack.c.b16 %v1742, %v1741
  %v1770 = vpack.c.b16 %v1744, %v1743
  %v1771 = vpack.c.b16 %v1746, %v1745
  %v1772 = vpack.c.b16 %v1748, %v1747
  %1797 = vmatprep.subr.bf16.mxu0 0
  %1798 = vmatpush1.bf16.msra.mxu0 %v1749
  %1799 = vmatprep.subr.bf16.mxu0 0
  %1800 = vmatpush1.bf16.msra.mxu0 %v1750
  %1801 = vmatprep.subr.bf16.mxu0 0
  %1802 = vmatpush1.bf16.msra.mxu0 %v1751
  %1803 = vmatprep.subr.bf16.mxu0 0
  %1804 = vmatpush1.bf16.msra.mxu0 %v1752
  %1805 = vmatprep.subr.bf16.mxu0 0
  %1806 = vmatpush1.bf16.msra.mxu0 %v1753
  %1807 = vmatprep.subr.bf16.mxu0 0
  %1808 = vmatpush1.bf16.msra.mxu0 %v1754
  %1809 = vmatprep.subr.bf16.mxu0 0
  %1810 = vmatpush1.bf16.msra.mxu0 %v1755
  %1811 = vmatprep.subr.bf16.mxu0 0
  %1812 = vmatpush1.bf16.msra.mxu0 %v1756
  %1813 = vmatprep.subr.bf16.mxu0 0
  %1814 = vmatpush1.bf16.msra.mxu0 %v1757
  %1815 = vmatprep.subr.bf16.mxu0 0
  %1816 = vmatpush1.bf16.msra.mxu0 %v1758
  %1817 = vmatprep.subr.bf16.mxu0 0
  %1818 = vmatpush1.bf16.msra.mxu0 %v1759
  %1819 = vmatprep.subr.bf16.mxu0 0
  %1820 = vmatpush1.bf16.msra.mxu0 %v1760
  %1821 = vmatprep.subr.bf16.mxu0 0
  %1822 = vmatpush1.bf16.msra.mxu0 %v1761
  %1823 = vmatprep.subr.bf16.mxu0 0
  %1824 = vmatpush1.bf16.msra.mxu0 %v1762
  %1825 = vmatprep.subr.bf16.mxu0 0
  %1826 = vmatpush1.bf16.msra.mxu0 %v1763
  %1827 = vmatprep.subr.bf16.mxu0 0
  %1828 = vmatpush1.bf16.msra.mxu0 %v1764
  %1829 = vmatprep.mubr.bf16.mxu0 %v1599
  %1830 = vmatmul.mubr.bf16.gmra.mrb[0].mxu0 %v1598
  %v1831 = vpop.f32.mrb[0].mxu0
  %v1832 = vadd.f32 0.0, %v1831
  %v1833 = vpop.f32.mrb[0].mxu0
  %v1834 = vpop.f32.mrb[0].mxu0
  %v1835 = vadd.f32 0.0, %v1834
  %v1836 = vpop.f32.mrb[0].mxu0
  %1837 = vmatprep.mubr.bf16.mxu0 %v1602
  %1838 = vmatmul.mubr.bf16.gmra.mrb[0].mxu0 %v1601
  %v1839 = vpop.f32.mrb[0].mxu0
  %v1840 = vadd.f32 0.0, %v1839
  %v1841 = vpop.f32.mrb[0].mxu0
  %v1842 = vpop.f32.mrb[0].mxu0
  %v1843 = vadd.f32 0.0, %v1842
  %v1844 = vpop.f32.mrb[0].mxu0
  %1845 = vdwg.mxu0
  %1846 = vmatprep.subr.bf16.mxu0 0
  %1847 = vmatpush1.bf16.msra.mxu0 %v1765
  %1848 = vmatprep.subr.bf16.mxu0 0
  %1849 = vmatpush1.bf16.msra.mxu0 %v1766
  %1850 = vmatprep.subr.bf16.mxu0 0
  %1851 = vmatpush1.bf16.msra.mxu0 %v1767
  %1852 = vmatprep.subr.bf16.mxu0 0
  %1853 = vmatpush1.bf16.msra.mxu0 %v1768
  %1854 = vmatprep.subr.bf16.mxu0 0
  %1855 = vmatpush1.bf16.msra.mxu0 %v1769
  %1856 = vmatprep.subr.bf16.mxu0 0
  %1857 = vmatpush1.bf16.msra.mxu0 %v1770
  %1858 = vmatprep.subr.bf16.mxu0 0
  %1859 = vmatpush1.bf16.msra.mxu0 %v1771
  %1860 = vmatprep.subr.bf16.mxu0 0
  %1861 = vmatpush1.bf16.msra.mxu0 %v1772
  %1862 = vmatprep.subr.bf16.mxu0 0
  %1863 = vmatpush1.bf16.msra.mxu0 0
  %1864 = vmatprep.subr.bf16.mxu0 0
  %1865 = vmatpush1.bf16.msra.mxu0 0
  %1866 = vmatprep.subr.bf16.mxu0 0
  %1867 = vmatpush1.bf16.msra.mxu0 0
  %1868 = vmatprep.subr.bf16.mxu0 0
  %1869 = vmatpush1.bf16.msra.mxu0 0
  %1870 = vmatprep.subr.bf16.mxu0 0
  %1871 = vmatpush1.bf16.msra.mxu0 0
  %1872 = vmatprep.subr.bf16.mxu0 0
  %1873 = vmatpush1.bf16.msra.mxu0 0
  %1874 = vmatprep.subr.bf16.mxu0 0
  %1875 = vmatpush1.bf16.msra.mxu0 0
  %1876 = vmatprep.subr.bf16.mxu0 0
  %1877 = vmatpush1.bf16.msra.mxu0 0
  %1878 = vmatprep.mubr.bf16.mxu0 0
  %1879 = vmatmul.mubr.bf16.gmra.mrb[0].mxu0 %v1600
  %v1880 = vpop.f32.mrb[0].mxu0
  %v1881 = vadd.f32 %v1832, %v1880
  %v1882 = vpop.f32.mrb[0].mxu0
  %v1883 = vpop.f32.mrb[0].mxu0
  %v1884 = vadd.f32 %v1835, %v1883
  %v1885 = vpop.f32.mrb[0].mxu0
  %1886 = vmatprep.mubr.bf16.mxu0 0
  %1887 = vmatmul.mubr.bf16.gmra.mrb[0].mxu0 %v1603
  %v1888 = vpop.f32.mrb[0].mxu0
  %v1889 = vadd.f32 %v1840, %v1888
  %v1890 = vpop.f32.mrb[0].mxu0
  %v1891 = vpop.f32.mrb[0].mxu0
  %v1892 = vadd.f32 %v1843, %v1891
  %v1893 = vpop.f32.mrb[0].mxu0
  %1894 = vdwg.mxu0
  %v1895 = vadd.f32 %v1881, %v1884
  %v1896 = vrot.slane %v1895, 4
  %v1897 = vadd.f32 %v1895, %v1896
  %v1898 = vrot.slane %v1897, 2
  %v1899 = vadd.f32 %v1897, %v1898
  %v1900 = vrot.slane %v1899, 1
  %v1901 = vadd.f32 %v1899, %v1900
  %v1902 = vadd.f32 %v1889, %v1892
  %v1903 = vrot.slane %v1902, 4
  %v1904 = vadd.f32 %v1902, %v1903
  %v1905 = vrot.slane %v1904, 2
  %v1906 = vadd.f32 %v1904, %v1905
  %v1907 = vrot.slane %v1906, 1
  %v1908 = vadd.f32 %v1906, %v1907
  %v1909 = vmul.f32 %v1881, %v1881
  %v1910 = vmul.f32 %v1884, %v1884
  %v1911 = vmul.f32 %v1889, %v1889
  %v1912 = vmul.f32 %v1892, %v1892
  %v1913 = vadd.f32 %v1909, %v1910
  %v1914 = vrot.slane %v1913, 4
  %v1915 = vadd.f32 %v1913, %v1914
  %v1916 = vrot.slane %v1915, 2
  %v1917 = vadd.f32 %v1915, %v1916
  %v1918 = vrot.slane %v1917, 1
  %v1919 = vadd.f32 %v1917, %v1918
  %v1920 = vadd.f32 %v1911, %v1912
  %v1921 = vrot.slane %v1920, 4
  %v1922 = vadd.f32 %v1920, %v1921
  %v1923 = vrot.slane %v1922, 2
  %v1924 = vadd.f32 %v1922, %v1923
  %v1925 = vrot.slane %v1924, 1
  %v1926 = vadd.f32 %v1924, %v1925
  %v1929 = vsel %vm433, %v1908, %v1901
  %1931 = vrot.lane.b32.xlu0 %v1929, 8
  %v1932 = vpop.permute.xlu0 %1931
  %v1934 = vrot.slane %v1932, 1
  %v1937 = vadd.f32 %v1901, %v1932
  %v1938 = vadd.f32 %v1908, %v1934
  %v1941 = vsel %vm433, %v1926, %v1919
  %1943 = vrot.lane.b32.xlu0 %v1941, 8
  %v1944 = vpop.permute.xlu0 %1943
  %v1946 = vrot.slane %v1944, 1
  %v1949 = vadd.f32 %v1919, %v1944
  %v1950 = vadd.f32 %v1926, %v1946
  %v1953 = vrot.slane %v1938, 7
  %v1954 = vsel %vm433, %v1953, %v1937
  %1956 = vrot.lane.b32.xlu0 %v1954, 16
  %v1957 = vpop.permute.xlu0 %1956
  %v1959 = vrot.slane %v1957, 1
  %v1962 = vadd.f32 %v1937, %v1957
  %v1963 = vadd.f32 %v1938, %v1959
  %v1966 = vrot.slane %v1950, 7
  %v1967 = vsel %vm433, %v1966, %v1949
  %1969 = vrot.lane.b32.xlu0 %v1967, 16
  %v1970 = vpop.permute.xlu0 %1969
  %v1972 = vrot.slane %v1970, 1
  %v1975 = vadd.f32 %v1949, %v1970
  %v1976 = vadd.f32 %v1950, %v1972
  %v1979 = vrot.slane %v1963, 7
  %v1980 = vsel %vm433, %v1979, %v1962
  %1982 = vrot.lane.b32.xlu0 %v1980, 32
  %v1983 = vpop.permute.xlu0 %1982
  %v1985 = vrot.slane %v1983, 1
  %v1988 = vadd.f32 %v1962, %v1983
  %v1989 = vadd.f32 %v1963, %v1985
  %v1992 = vrot.slane %v1976, 7
  %v1993 = vsel %vm433, %v1992, %v1975
  %1995 = vrot.lane.b32.xlu0 %v1993, 32
  %v1996 = vpop.permute.xlu0 %1995
  %v1998 = vrot.slane %v1996, 1
  %v2001 = vadd.f32 %v1975, %v1996
  %v2002 = vadd.f32 %v1976, %v1998
  %v2005 = vrot.slane %v1989, 7
  %v2006 = vsel %vm433, %v2005, %v1988
  %2008 = vrot.lane.b32.xlu0 %v2006, 64
  %v2009 = vpop.permute.xlu0 %2008
  %v2011 = vrot.slane %v2009, 1
  %v2014 = vadd.f32 %v1988, %v2009
  %v2015 = vadd.f32 %v1989, %v2011
  %v2018 = vrot.slane %v2002, 7
  %v2019 = vsel %vm433, %v2018, %v2001
  %2021 = vrot.lane.b32.xlu0 %v2019, 64
  %v2022 = vpop.permute.xlu0 %2021
  %v2024 = vrot.slane %v2022, 1
  %v2027 = vadd.f32 %v2001, %v2022
  %v2028 = vadd.f32 %v2002, %v2024
  %v2029 = vmul.f32 %v2014, 0.00390625
  %v2030 = vmul.f32 %v2015, 0.00390625
  %v2031 = vmul.f32 %v2027, 0.00390625
  %v2032 = vmul.f32 %v2028, 0.00390625
  %v2033 = vmul.f32 %v2029, %v2029
  %v2034 = vmul.f32 %v2030, %v2030
  %v2035 = vsub.f32 %v2031, %v2033
  %v2036 = vsub.f32 %v2032, %v2034
  %v2037 = vmax.f32 %v2035, 0.0
  %v2038 = vmax.f32 %v2036, 0.0
  %v2039 = vlaneseq
  %v2040 = vshrl.u32 %v2039, 7
  %v2041 = vsub.s32 0, %v2040
  %v2042 = vrot.slane %v2029, %v2041
  %v2043 = vlaneseq
  %v2044 = vshrl.u32 %v2043, 7
  %v2045 = vsub.s32 0, %v2044
  %v2046 = vrot.slane %v2030, %v2045
  %v2047 = vsub.f32 %v1881, %v2042
  %v2048 = vsub.f32 %v1884, %v2042
  %v2049 = vsub.f32 %v1889, %v2046
  %v2050 = vsub.f32 %v1892, %v2046
  %v2051 = vadd.f32 %v2037, 1e-05
  %v2052 = vadd.f32 %v2038, 1e-05
  %v2053 = vrsqrt.pop %v2051
  %v2054 = vrsqrt.pop %v2052
  %v2055 = vlaneseq
  %v2056 = vshrl.u32 %v2055, 7
  %v2057 = vsub.s32 0, %v2056
  %v2058 = vrot.slane %v2053, %v2057
  %v2059 = vlaneseq
  %v2060 = vshrl.u32 %v2059, 7
  %v2061 = vsub.s32 0, %v2060
  %v2062 = vrot.slane %v2054, %v2061
  %v2063 = vmul.f32 %v2047, %v2058
  %v2064 = vmul.f32 %v2048, %v2058
  %v2065 = vmul.f32 %v2049, %v2062
  %v2066 = vmul.f32 %v2050, %v2062
  %v2067 = vmul.f32 %v2063, 0.1
  %v2068 = vmul.f32 %v2064, 0.1
  %v2069 = vmul.f32 %v2065, 0.1
  %v2070 = vmul.f32 %v2066, 0.1
  %v2071 = vadd.f32 %v1073, %v2067
  %v2072 = vadd.f32 %v1074, %v2068
  %v2073 = vadd.f32 %v1075, %v2069
  %v2074 = vadd.f32 %v1076, %v2070
  %2075 = vst [vmem:[%s2] sm:$0xff] %v2071
  %2076 = vst [vmem:[%s2 + $0x8] sm:$0xff] %v2072
  %2077 = vst [vmem:[%s2 + $0x10] sm:$0xff] %v2073
  %2078 = vst [vmem:[%s2 + $0x18] sm:$0xff] %v2074
  // Predicated region
  $region10: #{resblocks_forward.1} parent=0 // pred_check
    _
  $region11: #{resblocks_forward.1} parent=0 // pred_check_branch
    %2080 = sbr.rel (0) target = $region13
  $region12: #{resblocks_forward.1} parent=0 // pred_region
    _
  $region13: #{resblocks_forward.1} parent=0 // pred_fallthru
    _
  // Predicated region
  $region14: #{resblocks_forward.1} parent=0 // pred_check
    _
  $region15: #{resblocks_forward.1} parent=0 // pred_check_branch
    %2082 = sbr.rel (0) target = $region17
  $region16: #{resblocks_forward.1} parent=0 // pred_region
    _
  $region17: #{resblocks_forward.1} parent=0 // pred_fallthru
    _

</llo_original>
